<compile_context>
chip_gen: v7x
topology: tpu7x:2x2x1
jax: 0.10.0
libtpu: 0.0.40
codegen_flags: <defaults>
</compile_context>

<pallas_src>
import math

import jax
import jax.numpy as jnp
from jax.experimental import pallas as pl
from jax.experimental.pallas import tpu as pltpu

FD = 20            # feature_dim
SEQ = 5            # seq_len
NB = 128           # lane band width (one lane tile)
NG = 4             # LSTM gates (i, f, g, o)
GW = NG * NB       # banded gate width = 512
HEADS = ("m1", "m2", "m12", "m21", "mc")

# ---- parameter-slab layout (rows are multiples of 8 -> aligned sublane views) ----
R_WIH = 0          # rows   0:20,  lanes 0:512 : W_ih, gate-banded            (20, 512)
R_WHH = 24         # rows  24:152, lanes 0:512 : W_hh, gate-banded, padded    (128, 512)
R_HEAD = 152       # rows 152:280:
#                     lanes   0:128 : fused head layer-1, lstm half           (128, 128)
#                     lanes 128:256 : fused block-diag head layer-2 (padded)  (128, 128)
#                     lanes 256:384 (rows 152:172) : head layer-1, raw-x half (20, 128)
#                     lanes 384:404 (rows 152:172) : base Linear weight       (20, 20)
R_BIAS = 280       # row 280: gate bias (banded, b_ih+b_hh); 281: base bias;
#                    row 282: fused head-1 bias (padded to 128); 283: head-2 bias (padded)
SLAB_SHAPE = (288, 512)


# ---------------------------------------------------------------------------
# Kernel
# ---------------------------------------------------------------------------
def _mind_lstm_kernel(x_ref, p_ref, out_ref):
    f32 = jnp.float32
    tile_b = x_ref.shape[0]

    # ---- unpack the single parameter slab (static, aligned views) ----
    wih = p_ref[R_WIH:R_WIH + FD, :]                      # (20, 512)
    whh = p_ref[R_WHH:R_WHH + NB, :]                      # (128, 512)
    w1h = p_ref[R_HEAD:R_HEAD + NB, 0:NB]                 # (128, 128)
    w2 = p_ref[R_HEAD:R_HEAD + NB, NB:2 * NB]             # (128, 128)
    w1x = p_ref[R_HEAD:R_HEAD + FD, 2 * NB:3 * NB]        # (20, 128)
    wb = p_ref[R_HEAD:R_HEAD + FD, 3 * NB:3 * NB + FD]    # (20, 20)
    bg = p_ref[R_BIAS + 0:R_BIAS + 1, :]                  # (1, 512)
    bb = p_ref[R_BIAS + 1:R_BIAS + 2, 0:FD]               # (1, 20)
    b1 = p_ref[R_BIAS + 2:R_BIAS + 3, 0:NB]               # (1, 128)
    b2 = p_ref[R_BIAS + 3:R_BIAS + 4, 0:NB]               # (1, 128)

    # ---- batched precompute: everything that does not depend on h ----
    xb = x_ref[...].astype(f32)                           # (tile_b, SEQ*FD)
    x_steps = [xb[:, t * FD:(t + 1) * FD] for t in range(SEQ)]
    x_all = jnp.concatenate(x_steps, axis=0)              # (SEQ*tile_b, 20) time-major
    base_all = jnp.maximum(
        jnp.dot(x_all, wb, preferred_element_type=f32) + bb, 0.0)
    # one big matmul for all steps; result is gate-banded; reshape is layout-free
    pre_gates = (jnp.dot(base_all, wih, preferred_element_type=f32) + bg
                 ).reshape(SEQ, tile_b, GW)

    # ---- serial recurrence: one (tile_b,128)@(128,512) matmul + gate math per step ----
    def apply_gates(gates, c):
        # 128-aligned band slices; padding lanes: sigmoid(0)=0.5, tanh(0)=0 -> c,h stay 0
        i_g = jax.nn.sigmoid(gates[:, 0 * NB:1 * NB])
        f_g = jax.nn.sigmoid(gates[:, 1 * NB:2 * NB])
        g_g = jnp.tanh(gates[:, 2 * NB:3 * NB])
        o_g = jax.nn.sigmoid(gates[:, 3 * NB:4 * NB])
        c_new = f_g * c + i_g * g_g
        return o_g * jnp.tanh(c_new), c_new

    c = jnp.zeros((tile_b, NB), f32)
    h, c = apply_gates(pre_gates[0], c)                   # h0 = c0 = 0 -> skip h@W_hh
    for t in range(1, SEQ):                               # static unroll (SEQ = 5)
        gates = pre_gates[t] + jnp.dot(h, whh, preferred_element_type=f32)
        h, c = apply_gates(gates, c)

    # ---- fused 5-head MLP (block structure baked into w1h / w1x / w2) ----
    hid = jnp.maximum(
        jnp.dot(h, w1h, preferred_element_type=f32)
        + jnp.dot(x_steps[SEQ - 1], w1x, preferred_element_type=f32)
        + b1, 0.0)                                        # (tile_b, 128); lanes 100:128 = 0
    out = jnp.dot(hid, w2, preferred_element_type=f32) + b2   # heads live in lanes 0:20
    out_ref[...] = out.astype(out_ref.dtype)              # full 128-lane (unmasked) store


# ---------------------------------------------------------------------------
# Parameter construction (PyTorch-style uniform init), fusion done once.
# ---------------------------------------------------------------------------
def init_params(key):
    p = {}

    def uni(k, shape, fan_in):
        bound = 1.0 / math.sqrt(fan_in)
        return jax.random.uniform(k, shape, jnp.float32, -bound, bound)

    keys = iter(jax.random.split(key, 32))
    p["wb"] = uni(next(keys), (FD, FD), FD)                # stored (in, out)
    p["bb"] = uni(next(keys), (FD,), FD)
    p["w_ih"] = uni(next(keys), (FD, 4 * FD), FD)          # gate order i, f, g, o
    p["w_hh"] = uni(next(keys), (FD, 4 * FD), FD)
    p["b_ih"] = uni(next(keys), (4 * FD,), FD)
    p["b_hh"] = uni(next(keys), (4 * FD,), FD)
    for k in HEADS:
        p["w1_" + k] = uni(next(keys), (2 * FD, FD), 2 * FD)
        p["b1_" + k] = uni(next(keys), (FD,), 2 * FD)
        p["w2_" + k] = uni(next(keys), (FD, 4), FD)
        p["b2_" + k] = uni(next(keys), (4,), FD)
    return p


def fuse_params(p):
    """Pack every parameter into one (288, 512) f32 slab (built once, wrapper-side)."""
    wih_b = jnp.zeros((FD, GW), jnp.float32)
    whh_b = jnp.zeros((NB, GW), jnp.float32)
    bg_b = jnp.zeros((GW,), jnp.float32)
    for j in range(NG):                                    # band each gate into its own 128 lanes
        wih_b = wih_b.at[:, j * NB:j * NB + FD].set(p["w_ih"][:, j * FD:(j + 1) * FD])
        whh_b = whh_b.at[:FD, j * NB:j * NB + FD].set(p["w_hh"][:, j * FD:(j + 1) * FD])
        bg_b = bg_b.at[j * NB:j * NB + FD].set(
            p["b_ih"][j * FD:(j + 1) * FD] + p["b_hh"][j * FD:(j + 1) * FD])

    w1h = jnp.zeros((NB, NB), jnp.float32)
    w1x = jnp.zeros((FD, NB), jnp.float32)
    w2 = jnp.zeros((NB, NB), jnp.float32)
    b1 = jnp.zeros((NB,), jnp.float32)
    b2 = jnp.zeros((NB,), jnp.float32)
    for idx, k in enumerate(HEADS):
        w1h = w1h.at[:FD, idx * FD:(idx + 1) * FD].set(p["w1_" + k][:FD, :])
        w1x = w1x.at[:, idx * FD:(idx + 1) * FD].set(p["w1_" + k][FD:, :])
        w2 = w2.at[idx * FD:(idx + 1) * FD, idx * 4:(idx + 1) * 4].set(p["w2_" + k])
        b1 = b1.at[idx * FD:(idx + 1) * FD].set(p["b1_" + k])
        b2 = b2.at[idx * 4:(idx + 1) * 4].set(p["b2_" + k])

    slab = jnp.zeros(SLAB_SHAPE, jnp.float32)
    slab = slab.at[R_WIH:R_WIH + FD, :].set(wih_b)
    slab = slab.at[R_WHH:R_WHH + NB, :].set(whh_b)
    slab = slab.at[R_HEAD:R_HEAD + NB, 0:NB].set(w1h)
    slab = slab.at[R_HEAD:R_HEAD + NB, NB:2 * NB].set(w2)
    slab = slab.at[R_HEAD:R_HEAD + FD, 2 * NB:3 * NB].set(w1x)
    slab = slab.at[R_HEAD:R_HEAD + FD, 3 * NB:3 * NB + FD].set(p["wb"])
    slab = slab.at[R_BIAS + 0, :].set(bg_b)
    slab = slab.at[R_BIAS + 1, 0:FD].set(p["bb"])
    slab = slab.at[R_BIAS + 2, 0:NB].set(b1)
    slab = slab.at[R_BIAS + 3, 0:NB].set(b2)
    return slab


# ---------------------------------------------------------------------------
# Wrapper
# ---------------------------------------------------------------------------
def _round_up(n, m):
    return ((n + m - 1) // m) * m


def _choose_tile(batch):
    # Cap keeps the banded (SEQ, tile_b, 512) pre-gates + buffers far below the
    # 32 MiB scoped-VMEM default on all generations (incl. v7x's 64 MiB physical).
    cap = 512
    # Keep >= 2 "parallel" tiles when the batch is big enough so v7x can use both TCs.
    min_tiles = 2 if batch > cap else 1
    n_tiles = max(min_tiles, pl.cdiv(batch, cap))
    tile_b = _round_up(pl.cdiv(batch, n_tiles), 8)         # minimise batch-padding waste
    n_tiles = pl.cdiv(batch, tile_b)
    return tile_b, n_tiles


def mind_lstm_forward(x, slab):
    """x: (B, SEQ, FD) float32 -> (m1, m2, m12, m21, mc), each (B, 4)."""
    B = x.shape[0]
    tile_b, n_tiles = _choose_tile(B)
    b_pad = tile_b * n_tiles

    x2 = x.reshape(B, SEQ * FD).astype(jnp.float32)        # free reshape, no transpose
    if b_pad != B:
        x2 = jnp.pad(x2, ((0, b_pad - B), (0, 0)))

    flops_row = 2 * (SEQ * FD * FD                         # base linear
                     + SEQ * FD * GW                       # pre-gates
                     + (SEQ - 1) * NB * GW                 # recurrence
                     + NB * NB + FD * NB                   # fused head layer 1
                     + NB * NB)                            # fused head layer 2
    cost = pl.CostEstimate(
        flops=int(flops_row) * int(b_pad),
        transcendentals=int(SEQ * 5 * NB) * int(b_pad),
        bytes_accessed=int(4 * (b_pad * SEQ * FD + b_pad * NB
                                + SLAB_SHAPE[0] * SLAB_SHAPE[1])),
    )

    out = pl.pallas_call(
        _mind_lstm_kernel,
        out_shape=jax.ShapeDtypeStruct((b_pad, NB), jnp.float32),
        grid_spec=pltpu.PrefetchScalarGridSpec(
            num_scalar_prefetch=0,
            grid=(n_tiles,),
            in_specs=[
                pl.BlockSpec((tile_b, SEQ * FD), lambda i: (i, 0)),   # x (tiled on batch)
                pl.BlockSpec(SLAB_SHAPE, lambda i: (0, 0)),           # parameter slab (resident)
            ],
            out_specs=pl.BlockSpec((tile_b, NB), lambda i: (i, 0)),   # lane-dense output
        ),
        compiler_params=pltpu.CompilerParams(
            dimension_semantics=("parallel",)),
        cost_estimate=cost,
    )(x2, slab)

    out = out[:B, :5 * 4]
    return tuple(out[:, 4 * i:4 * (i + 1)] for i in range(5))


# ---------------------------------------------------------------------------
# Pure-JAX reference (unfused) for validation
# ---------------------------------------------------------------------------
def _reference_forward(x, p):
    B = x.shape[0]
    relu = lambda v: jnp.maximum(v, 0.0)
    sigmoid = lambda v: 1.0 / (1.0 + jnp.exp(-v))

    base = relu(x.reshape(-1, FD) @ p["wb"] + p["bb"]).reshape(B, SEQ, FD)
    h = jnp.zeros((B, FD), jnp.float32)
    c = jnp.zeros((B, FD), jnp.float32)
    for t in range(SEQ):
        gates = (base[:, t, :] @ p["w_ih"] + p["b_ih"]
                 + h @ p["w_hh"] + p["b_hh"])
        i = sigmoid(gates[:, 0:FD])
        f = sigmoid(gates[:, FD:2 * FD])
        g = jnp.tanh(gates[:, 2 * FD:3 * FD])
        o = sigmoid(gates[:, 3 * FD:4 * FD])
        c = f * c + i * g
        h = o * jnp.tanh(c)

    feat = jnp.concatenate([h, x[:, SEQ - 1, :]], axis=1)              # (B, 40)
    outs = []
    for k in HEADS:
        hid = relu(feat @ p["w1_" + k] + p["b1_" + k])                 # dropout = identity
        outs.append(hid @ p["w2_" + k] + p["b2_" + k])
    return tuple(outs)


# ---------------------------------------------------------------------------
if __name__ == "__main__":
    key = jax.random.PRNGKey(0)
    kx, kp = jax.random.split(key)

    B = 4
    x = jax.random.normal(kx, (B, SEQ, FD), jnp.float32)

    raw = init_params(kp)
    slab = fuse_params(raw)

    fwd = jax.jit(mind_lstm_forward)
    outs = fwd(x, slab)
    outs = jax.block_until_ready(outs)

    refs = _reference_forward(x, raw)
    for o, r in zip(outs, refs):
        assert o.shape == (B, 4)
        assert jnp.allclose(o, r, atol=1e-4, rtol=1e-4), float(jnp.max(jnp.abs(o - r)))

    print("KERNEL_OK")
</pallas_src>

<mosaic_0001>
module attributes {stable_mosaic.version = 11 : i64} {
  func.func @_mind_lstm_kernel(%arg0: i32, %arg1: memref<8x100xf32, #tpu.memory_space<vmem>>, %arg2: memref<288x512xf32, #tpu.memory_space<vmem>>, %arg3: memref<8x128xf32, #tpu.memory_space<vmem>>) attributes {dimension_semantics = [#tpu.dimension_semantics<parallel>], iteration_bounds = array<i64: 1>, scalar_prefetch = 0 : i64, scratch_operands = 0 : i64, tpu.core_type = #tpu.core_type<tc>, window_params = [{transform_indices = @transform_0, window_bounds = array<i64: 8, 100>}, {pipeline_mode = #tpu.pipeline_mode<synchronous>, transform_indices = @transform_1, window_bounds = array<i64: 288, 512>}, {transform_indices = @transform_2, window_bounds = array<i64: 8, 128>}]} {
    %c0 = arith.constant 0 : index
    %c0_0 = arith.constant 0 : index
    %0 = vector.load %arg2[%c0, %c0_0] : memref<288x512xf32, #tpu.memory_space<vmem>>, vector<20x512xf32>
    %c24 = arith.constant 24 : index
    %c0_1 = arith.constant 0 : index
    %1 = vector.load %arg2[%c24, %c0_1] : memref<288x512xf32, #tpu.memory_space<vmem>>, vector<128x512xf32>
    %c152 = arith.constant 152 : index
    %c0_2 = arith.constant 0 : index
    %2 = vector.load %arg2[%c152, %c0_2] : memref<288x512xf32, #tpu.memory_space<vmem>>, vector<128x128xf32>
    %c152_3 = arith.constant 152 : index
    %c128 = arith.constant 128 : index
    %3 = vector.load %arg2[%c152_3, %c128] : memref<288x512xf32, #tpu.memory_space<vmem>>, vector<128x128xf32>
    %c152_4 = arith.constant 152 : index
    %c256 = arith.constant 256 : index
    %4 = vector.load %arg2[%c152_4, %c256] : memref<288x512xf32, #tpu.memory_space<vmem>>, vector<20x128xf32>
    %c152_5 = arith.constant 152 : index
    %c384 = arith.constant 384 : index
    %5 = vector.load %arg2[%c152_5, %c384] : memref<288x512xf32, #tpu.memory_space<vmem>>, vector<20x20xf32>
    %c280 = arith.constant 280 : index
    %c0_6 = arith.constant 0 : index
    %6 = vector.load %arg2[%c280, %c0_6] : memref<288x512xf32, #tpu.memory_space<vmem>>, vector<1x512xf32>
    %c281 = arith.constant 281 : index
    %c0_7 = arith.constant 0 : index
    %7 = vector.load %arg2[%c281, %c0_7] : memref<288x512xf32, #tpu.memory_space<vmem>>, vector<1x20xf32>
    %c282 = arith.constant 282 : index
    %c0_8 = arith.constant 0 : index
    %8 = vector.load %arg2[%c282, %c0_8] : memref<288x512xf32, #tpu.memory_space<vmem>>, vector<1x128xf32>
    %c283 = arith.constant 283 : index
    %c0_9 = arith.constant 0 : index
    %9 = vector.load %arg2[%c283, %c0_9] : memref<288x512xf32, #tpu.memory_space<vmem>>, vector<1x128xf32>
    %c0_10 = arith.constant 0 : index
    %c0_11 = arith.constant 0 : index
    %10 = vector.load %arg1[%c0_10, %c0_11] : memref<8x100xf32, #tpu.memory_space<vmem>>, vector<8x100xf32>
    %11 = vector.extract_strided_slice %10 {offsets = [0, 0], sizes = [8, 20], strides = [1, 1]} : vector<8x100xf32> to vector<8x20xf32>
    %12 = vector.extract_strided_slice %10 {offsets = [0, 20], sizes = [8, 20], strides = [1, 1]} : vector<8x100xf32> to vector<8x20xf32>
    %13 = vector.extract_strided_slice %10 {offsets = [0, 40], sizes = [8, 20], strides = [1, 1]} : vector<8x100xf32> to vector<8x20xf32>
    %14 = vector.extract_strided_slice %10 {offsets = [0, 60], sizes = [8, 20], strides = [1, 1]} : vector<8x100xf32> to vector<8x20xf32>
    %15 = vector.extract_strided_slice %10 {offsets = [0, 80], sizes = [8, 20], strides = [1, 1]} : vector<8x100xf32> to vector<8x20xf32>
    %16 = tpu.concatenate %11, %12, %13, %14, %15 in 0 : vector<8x20xf32>, vector<8x20xf32>, vector<8x20xf32>, vector<8x20xf32>, vector<8x20xf32> -> vector<40x20xf32>
    %cst = arith.constant dense<0.000000e+00> : vector<40x20xf32>
    %17 = tpu.matmul %16, %5, %cst {dimension_numbers = #tpu.dot_dimension_numbers<[1], [0], [0], [1], [0, 0, 1, 1], [], []>} : vector<40x20xf32>, vector<20x20xf32>, vector<40x20xf32> -> vector<40x20xf32>
    %18 = vector.broadcast %7 : vector<1x20xf32> to vector<40x20xf32>
    %19 = arith.addf %17, %18 : vector<40x20xf32>
    %cst_12 = arith.constant 0.000000e+00 : f32
    %20 = vector.broadcast %cst_12 : f32 to vector<40x20xf32>
    %21 = arith.maximumf %19, %20 : vector<40x20xf32>
    %cst_13 = arith.constant dense<0.000000e+00> : vector<40x512xf32>
    %22 = tpu.matmul %21, %0, %cst_13 {dimension_numbers = #tpu.dot_dimension_numbers<[1], [0], [0], [1], [0, 0, 1, 1], [], []>} : vector<40x20xf32>, vector<20x512xf32>, vector<40x512xf32> -> vector<40x512xf32>
    %23 = vector.broadcast %6 : vector<1x512xf32> to vector<40x512xf32>
    %24 = arith.addf %22, %23 : vector<40x512xf32>
    %25 = vector.shape_cast %24 : vector<40x512xf32> to vector<5x8x512xf32>
    %cst_14 = arith.constant 0.000000e+00 : f32
    %26 = vector.broadcast %cst_14 : f32 to vector<8x128xf32>
    %27 = vector.extract_strided_slice %25 {offsets = [0, 0, 0], sizes = [1, 8, 512], strides = [1, 1, 1]} : vector<5x8x512xf32> to vector<1x8x512xf32>
    %28 = vector.shape_cast %27 : vector<1x8x512xf32> to vector<8x512xf32>
    %29 = vector.extract_strided_slice %28 {offsets = [0, 0], sizes = [8, 128], strides = [1, 1]} : vector<8x512xf32> to vector<8x128xf32>
    %30 = arith.negf %29 : vector<8x128xf32>
    %31 = math.exp %30 : vector<8x128xf32>
    %cst_15 = arith.constant 1.000000e+00 : f32
    %32 = vector.broadcast %cst_15 : f32 to vector<8x128xf32>
    %33 = arith.addf %32, %31 : vector<8x128xf32>
    %34 = arith.divf %32, %33 : vector<8x128xf32>
    %35 = vector.extract_strided_slice %28 {offsets = [0, 128], sizes = [8, 128], strides = [1, 1]} : vector<8x512xf32> to vector<8x128xf32>
    %36 = arith.negf %35 : vector<8x128xf32>
    %37 = math.exp %36 : vector<8x128xf32>
    %cst_16 = arith.constant 1.000000e+00 : f32
    %38 = vector.broadcast %cst_16 : f32 to vector<8x128xf32>
    %39 = arith.addf %38, %37 : vector<8x128xf32>
    %40 = arith.divf %38, %39 : vector<8x128xf32>
    %41 = vector.extract_strided_slice %28 {offsets = [0, 256], sizes = [8, 128], strides = [1, 1]} : vector<8x512xf32> to vector<8x128xf32>
    %42 = math.tanh %41 : vector<8x128xf32>
    %43 = vector.extract_strided_slice %28 {offsets = [0, 384], sizes = [8, 128], strides = [1, 1]} : vector<8x512xf32> to vector<8x128xf32>
    %44 = arith.negf %43 : vector<8x128xf32>
    %45 = math.exp %44 : vector<8x128xf32>
    %cst_17 = arith.constant 1.000000e+00 : f32
    %46 = vector.broadcast %cst_17 : f32 to vector<8x128xf32>
    %47 = arith.addf %46, %45 : vector<8x128xf32>
    %48 = arith.divf %46, %47 : vector<8x128xf32>
    %49 = arith.mulf %40, %26 : vector<8x128xf32>
    %50 = arith.mulf %34, %42 : vector<8x128xf32>
    %51 = arith.addf %49, %50 : vector<8x128xf32>
    %52 = math.tanh %51 : vector<8x128xf32>
    %53 = arith.mulf %48, %52 : vector<8x128xf32>
    %54 = vector.extract_strided_slice %25 {offsets = [1, 0, 0], sizes = [1, 8, 512], strides = [1, 1, 1]} : vector<5x8x512xf32> to vector<1x8x512xf32>
    %55 = vector.shape_cast %54 : vector<1x8x512xf32> to vector<8x512xf32>
    %cst_18 = arith.constant dense<0.000000e+00> : vector<8x512xf32>
    %56 = tpu.matmul %53, %1, %cst_18 {dimension_numbers = #tpu.dot_dimension_numbers<[1], [0], [0], [1], [0, 0, 1, 1], [], []>} : vector<8x128xf32>, vector<128x512xf32>, vector<8x512xf32> -> vector<8x512xf32>
    %57 = arith.addf %55, %56 : vector<8x512xf32>
    %58 = vector.extract_strided_slice %57 {offsets = [0, 0], sizes = [8, 128], strides = [1, 1]} : vector<8x512xf32> to vector<8x128xf32>
    %59 = arith.negf %58 : vector<8x128xf32>
    %60 = math.exp %59 : vector<8x128xf32>
    %cst_19 = arith.constant 1.000000e+00 : f32
    %61 = vector.broadcast %cst_19 : f32 to vector<8x128xf32>
    %62 = arith.addf %61, %60 : vector<8x128xf32>
    %63 = arith.divf %61, %62 : vector<8x128xf32>
    %64 = vector.extract_strided_slice %57 {offsets = [0, 128], sizes = [8, 128], strides = [1, 1]} : vector<8x512xf32> to vector<8x128xf32>
    %65 = arith.negf %64 : vector<8x128xf32>
    %66 = math.exp %65 : vector<8x128xf32>
    %cst_20 = arith.constant 1.000000e+00 : f32
    %67 = vector.broadcast %cst_20 : f32 to vector<8x128xf32>
    %68 = arith.addf %67, %66 : vector<8x128xf32>
    %69 = arith.divf %67, %68 : vector<8x128xf32>
    %70 = vector.extract_strided_slice %57 {offsets = [0, 256], sizes = [8, 128], strides = [1, 1]} : vector<8x512xf32> to vector<8x128xf32>
    %71 = math.tanh %70 : vector<8x128xf32>
    %72 = vector.extract_strided_slice %57 {offsets = [0, 384], sizes = [8, 128], strides = [1, 1]} : vector<8x512xf32> to vector<8x128xf32>
    %73 = arith.negf %72 : vector<8x128xf32>
    %74 = math.exp %73 : vector<8x128xf32>
    %cst_21 = arith.constant 1.000000e+00 : f32
    %75 = vector.broadcast %cst_21 : f32 to vector<8x128xf32>
    %76 = arith.addf %75, %74 : vector<8x128xf32>
    %77 = arith.divf %75, %76 : vector<8x128xf32>
    %78 = arith.mulf %69, %51 : vector<8x128xf32>
    %79 = arith.mulf %63, %71 : vector<8x128xf32>
    %80 = arith.addf %78, %79 : vector<8x128xf32>
    %81 = math.tanh %80 : vector<8x128xf32>
    %82 = arith.mulf %77, %81 : vector<8x128xf32>
    %83 = vector.extract_strided_slice %25 {offsets = [2, 0, 0], sizes = [1, 8, 512], strides = [1, 1, 1]} : vector<5x8x512xf32> to vector<1x8x512xf32>
    %84 = vector.shape_cast %83 : vector<1x8x512xf32> to vector<8x512xf32>
    %cst_22 = arith.constant dense<0.000000e+00> : vector<8x512xf32>
    %85 = tpu.matmul %82, %1, %cst_22 {dimension_numbers = #tpu.dot_dimension_numbers<[1], [0], [0], [1], [0, 0, 1, 1], [], []>} : vector<8x128xf32>, vector<128x512xf32>, vector<8x512xf32> -> vector<8x512xf32>
    %86 = arith.addf %84, %85 : vector<8x512xf32>
    %87 = vector.extract_strided_slice %86 {offsets = [0, 0], sizes = [8, 128], strides = [1, 1]} : vector<8x512xf32> to vector<8x128xf32>
    %88 = arith.negf %87 : vector<8x128xf32>
    %89 = math.exp %88 : vector<8x128xf32>
    %cst_23 = arith.constant 1.000000e+00 : f32
    %90 = vector.broadcast %cst_23 : f32 to vector<8x128xf32>
    %91 = arith.addf %90, %89 : vector<8x128xf32>
    %92 = arith.divf %90, %91 : vector<8x128xf32>
    %93 = vector.extract_strided_slice %86 {offsets = [0, 128], sizes = [8, 128], strides = [1, 1]} : vector<8x512xf32> to vector<8x128xf32>
    %94 = arith.negf %93 : vector<8x128xf32>
    %95 = math.exp %94 : vector<8x128xf32>
    %cst_24 = arith.constant 1.000000e+00 : f32
    %96 = vector.broadcast %cst_24 : f32 to vector<8x128xf32>
    %97 = arith.addf %96, %95 : vector<8x128xf32>
    %98 = arith.divf %96, %97 : vector<8x128xf32>
    %99 = vector.extract_strided_slice %86 {offsets = [0, 256], sizes = [8, 128], strides = [1, 1]} : vector<8x512xf32> to vector<8x128xf32>
    %100 = math.tanh %99 : vector<8x128xf32>
    %101 = vector.extract_strided_slice %86 {offsets = [0, 384], sizes = [8, 128], strides = [1, 1]} : vector<8x512xf32> to vector<8x128xf32>
    %102 = arith.negf %101 : vector<8x128xf32>
    %103 = math.exp %102 : vector<8x128xf32>
    %cst_25 = arith.constant 1.000000e+00 : f32
    %104 = vector.broadcast %cst_25 : f32 to vector<8x128xf32>
    %105 = arith.addf %104, %103 : vector<8x128xf32>
    %106 = arith.divf %104, %105 : vector<8x128xf32>
    %107 = arith.mulf %98, %80 : vector<8x128xf32>
    %108 = arith.mulf %92, %100 : vector<8x128xf32>
    %109 = arith.addf %107, %108 : vector<8x128xf32>
    %110 = math.tanh %109 : vector<8x128xf32>
    %111 = arith.mulf %106, %110 : vector<8x128xf32>
    %112 = vector.extract_strided_slice %25 {offsets = [3, 0, 0], sizes = [1, 8, 512], strides = [1, 1, 1]} : vector<5x8x512xf32> to vector<1x8x512xf32>
    %113 = vector.shape_cast %112 : vector<1x8x512xf32> to vector<8x512xf32>
    %cst_26 = arith.constant dense<0.000000e+00> : vector<8x512xf32>
    %114 = tpu.matmul %111, %1, %cst_26 {dimension_numbers = #tpu.dot_dimension_numbers<[1], [0], [0], [1], [0, 0, 1, 1], [], []>} : vector<8x128xf32>, vector<128x512xf32>, vector<8x512xf32> -> vector<8x512xf32>
    %115 = arith.addf %113, %114 : vector<8x512xf32>
    %116 = vector.extract_strided_slice %115 {offsets = [0, 0], sizes = [8, 128], strides = [1, 1]} : vector<8x512xf32> to vector<8x128xf32>
    %117 = arith.negf %116 : vector<8x128xf32>
    %118 = math.exp %117 : vector<8x128xf32>
    %cst_27 = arith.constant 1.000000e+00 : f32
    %119 = vector.broadcast %cst_27 : f32 to vector<8x128xf32>
    %120 = arith.addf %119, %118 : vector<8x128xf32>
    %121 = arith.divf %119, %120 : vector<8x128xf32>
    %122 = vector.extract_strided_slice %115 {offsets = [0, 128], sizes = [8, 128], strides = [1, 1]} : vector<8x512xf32> to vector<8x128xf32>
    %123 = arith.negf %122 : vector<8x128xf32>
    %124 = math.exp %123 : vector<8x128xf32>
    %cst_28 = arith.constant 1.000000e+00 : f32
    %125 = vector.broadcast %cst_28 : f32 to vector<8x128xf32>
    %126 = arith.addf %125, %124 : vector<8x128xf32>
    %127 = arith.divf %125, %126 : vector<8x128xf32>
    %128 = vector.extract_strided_slice %115 {offsets = [0, 256], sizes = [8, 128], strides = [1, 1]} : vector<8x512xf32> to vector<8x128xf32>
    %129 = math.tanh %128 : vector<8x128xf32>
    %130 = vector.extract_strided_slice %115 {offsets = [0, 384], sizes = [8, 128], strides = [1, 1]} : vector<8x512xf32> to vector<8x128xf32>
    %131 = arith.negf %130 : vector<8x128xf32>
    %132 = math.exp %131 : vector<8x128xf32>
    %cst_29 = arith.constant 1.000000e+00 : f32
    %133 = vector.broadcast %cst_29 : f32 to vector<8x128xf32>
    %134 = arith.addf %133, %132 : vector<8x128xf32>
    %135 = arith.divf %133, %134 : vector<8x128xf32>
    %136 = arith.mulf %127, %109 : vector<8x128xf32>
    %137 = arith.mulf %121, %129 : vector<8x128xf32>
    %138 = arith.addf %136, %137 : vector<8x128xf32>
    %139 = math.tanh %138 : vector<8x128xf32>
    %140 = arith.mulf %135, %139 : vector<8x128xf32>
    %141 = vector.extract_strided_slice %25 {offsets = [4, 0, 0], sizes = [1, 8, 512], strides = [1, 1, 1]} : vector<5x8x512xf32> to vector<1x8x512xf32>
    %142 = vector.shape_cast %141 : vector<1x8x512xf32> to vector<8x512xf32>
    %cst_30 = arith.constant dense<0.000000e+00> : vector<8x512xf32>
    %143 = tpu.matmul %140, %1, %cst_30 {dimension_numbers = #tpu.dot_dimension_numbers<[1], [0], [0], [1], [0, 0, 1, 1], [], []>} : vector<8x128xf32>, vector<128x512xf32>, vector<8x512xf32> -> vector<8x512xf32>
    %144 = arith.addf %142, %143 : vector<8x512xf32>
    %145 = vector.extract_strided_slice %144 {offsets = [0, 0], sizes = [8, 128], strides = [1, 1]} : vector<8x512xf32> to vector<8x128xf32>
    %146 = arith.negf %145 : vector<8x128xf32>
    %147 = math.exp %146 : vector<8x128xf32>
    %cst_31 = arith.constant 1.000000e+00 : f32
    %148 = vector.broadcast %cst_31 : f32 to vector<8x128xf32>
    %149 = arith.addf %148, %147 : vector<8x128xf32>
    %150 = arith.divf %148, %149 : vector<8x128xf32>
    %151 = vector.extract_strided_slice %144 {offsets = [0, 128], sizes = [8, 128], strides = [1, 1]} : vector<8x512xf32> to vector<8x128xf32>
    %152 = arith.negf %151 : vector<8x128xf32>
    %153 = math.exp %152 : vector<8x128xf32>
    %cst_32 = arith.constant 1.000000e+00 : f32
    %154 = vector.broadcast %cst_32 : f32 to vector<8x128xf32>
    %155 = arith.addf %154, %153 : vector<8x128xf32>
    %156 = arith.divf %154, %155 : vector<8x128xf32>
    %157 = vector.extract_strided_slice %144 {offsets = [0, 256], sizes = [8, 128], strides = [1, 1]} : vector<8x512xf32> to vector<8x128xf32>
    %158 = math.tanh %157 : vector<8x128xf32>
    %159 = vector.extract_strided_slice %144 {offsets = [0, 384], sizes = [8, 128], strides = [1, 1]} : vector<8x512xf32> to vector<8x128xf32>
    %160 = arith.negf %159 : vector<8x128xf32>
    %161 = math.exp %160 : vector<8x128xf32>
    %cst_33 = arith.constant 1.000000e+00 : f32
    %162 = vector.broadcast %cst_33 : f32 to vector<8x128xf32>
    %163 = arith.addf %162, %161 : vector<8x128xf32>
    %164 = arith.divf %162, %163 : vector<8x128xf32>
    %165 = arith.mulf %156, %138 : vector<8x128xf32>
    %166 = arith.mulf %150, %158 : vector<8x128xf32>
    %167 = arith.addf %165, %166 : vector<8x128xf32>
    %168 = math.tanh %167 : vector<8x128xf32>
    %169 = arith.mulf %164, %168 : vector<8x128xf32>
    %cst_34 = arith.constant dense<0.000000e+00> : vector<8x128xf32>
    %170 = tpu.matmul %169, %2, %cst_34 {dimension_numbers = #tpu.dot_dimension_numbers<[1], [0], [0], [1], [0, 0, 1, 1], [], []>} : vector<8x128xf32>, vector<128x128xf32>, vector<8x128xf32> -> vector<8x128xf32>
    %cst_35 = arith.constant dense<0.000000e+00> : vector<8x128xf32>
    %171 = tpu.matmul %15, %4, %cst_35 {dimension_numbers = #tpu.dot_dimension_numbers<[1], [0], [0], [1], [0, 0, 1, 1], [], []>} : vector<8x20xf32>, vector<20x128xf32>, vector<8x128xf32> -> vector<8x128xf32>
    %172 = arith.addf %170, %171 : vector<8x128xf32>
    %173 = vector.broadcast %8 : vector<1x128xf32> to vector<8x128xf32>
    %174 = arith.addf %172, %173 : vector<8x128xf32>
    %cst_36 = arith.constant 0.000000e+00 : f32
    %175 = vector.broadcast %cst_36 : f32 to vector<8x128xf32>
    %176 = arith.maximumf %174, %175 : vector<8x128xf32>
    %cst_37 = arith.constant dense<0.000000e+00> : vector<8x128xf32>
    %177 = tpu.matmul %176, %3, %cst_37 {dimension_numbers = #tpu.dot_dimension_numbers<[1], [0], [0], [1], [0, 0, 1, 1], [], []>} : vector<8x128xf32>, vector<128x128xf32>, vector<8x128xf32> -> vector<8x128xf32>
    %178 = vector.broadcast %9 : vector<1x128xf32> to vector<8x128xf32>
    %179 = arith.addf %177, %178 : vector<8x128xf32>
    %c0_38 = arith.constant 0 : index
    %c0_39 = arith.constant 0 : index
    %180 = vector.load %arg3[%c0_38, %c0_39] : memref<8x128xf32, #tpu.memory_space<vmem>>, vector<8x128xf32>
    tpu.vector_store %arg3[%c0_38, %c0_39], %179 {strides = array<i32>} : memref<8x128xf32, #tpu.memory_space<vmem>>, vector<8x128xf32>,
    return
  }
  func.func @transform_0(%arg0: i32) -> (i32, i32) {
    %c0_i32 = arith.constant 0 : i32
    %c0_i32_0 = arith.constant 0 : i32
    return %arg0, %c0_i32 : i32, i32
  }
  func.func @transform_1(%arg0: i32) -> (i32, i32) {
    %c0_i32 = arith.constant 0 : i32
    %c0_i32_0 = arith.constant 0 : i32
    %c0_i32_1 = arith.constant 0 : i32
    return %c0_i32, %c0_i32_0 : i32, i32
  }
  func.func @transform_2(%arg0: i32) -> (i32, i32) {
    %c0_i32 = arith.constant 0 : i32
    %c0_i32_0 = arith.constant 0 : i32
    return %arg0, %c0_i32 : i32, i32
  }
}

</mosaic_0001>

<llo_original>
// kernel: mind_lstm_forward.1
$region0: #{mind_lstm_forward.1}
  #allocation0 [shape = 'u32[]', space=smem, size = 0x4, offset = 0x4, fixed_abs, tag = 'smem constant byte address 0x4 - core index']
  #allocation1 [shape = 'u32[144,128]{1,0:T(1,128)}', space=vmem, size = 0x12000, scoped, tag = 'internal scratch']
  %s0 = inlined_call_operand.vmem [shape: f32[8,100], index: 0, kind: input, shape index: {}]
  %s1 = inlined_call_operand.hbm [shape: f32[288,512], index: 1, kind: input, shape index: {}]
  %s2 = inlined_call_operand.vmem [shape: f32[8,128], index: 2, kind: output, shape index: {}]
  %s3 = sld [smem:[#allocation0]]
  $region22: #{mind_lstm_forward.1} parent=0
    _
  %s5 = ssub.s32 1, %s3
  %s6 = scalar_select 0, %s5, %s3
  $region1: #{mind_lstm_forward.1} parent=0
    #allocation2 [shape = 'u8[589824]{0}', space=vmem, size = 0x90000, scoped, tag = 'input window, operand 1, single buffered']
    #allocation3 [shape = 's32[1]{0}', space=sflag, size = 0x4, scoped, tag = 'scoped memory for mind_lstm_forward.1']
    %7 = vsyncpa [#allocation3], 0
    // Predicated region
    $region2: #{mind_lstm_forward.1} parent=1 // pred_check
      _
    $region3: #{mind_lstm_forward.1} parent=1 // pred_check_branch
      %9 = sbr.rel (0) target = $region5
    $region4: #{mind_lstm_forward.1} parent=1 // pred_region
      _
    $region5: #{mind_lstm_forward.1} parent=1 // pred_fallthru
      _
    // Predicated region
    $region6: #{mind_lstm_forward.1} parent=1 // pred_check
      _
    $region7: #{mind_lstm_forward.1} parent=1 // pred_check_branch
      %11 = sbr.rel (0) target = $region9
    $region8: #{mind_lstm_forward.1} parent=1 // pred_region
      %s13 = ssub.s32 18432, 18432
      %14 = vsyncadd [#allocation3], %s13
      %s15 = sshll.u32 [#allocation2], 4
      %s16 = int_to_ptr.vmem [resolvable:$true] %s15
      %21 = dma.hbm_to_vmem [thread:$0]  %s1, 18432, %s16, [#allocation3], 512, 512, 32
    $region9: #{mind_lstm_forward.1} parent=1 // pred_fallthru
      _
    // Predicated region
    $region10: #{mind_lstm_forward.1} parent=1 // pred_check
      _
    $region11: #{mind_lstm_forward.1} parent=1 // pred_check_branch
      %23 = sbr.rel (0) target = $region13
    $region12: #{mind_lstm_forward.1} parent=1 // pred_region
      %24 = dma.done [#allocation3], 18432
    $region13: #{mind_lstm_forward.1} parent=1 // pred_fallthru
      _
    %v25 = vld [vmem:[#allocation2] sm:$0xff]
    %v26 = vld [vmem:[#allocation2 + $0x8] sm:$0xff]
    %v27 = vld [vmem:[#allocation2 + $0x10] sm:$0xff]
    %v28 = vld [vmem:[#allocation2 + $0x18] sm:$0xff]
    %v29 = vld [vmem:[#allocation2 + $0x20] sm:$0xff]
    %v30 = vld [vmem:[#allocation2 + $0x28] sm:$0xff]
    %v31 = vld [vmem:[#allocation2 + $0x30] sm:$0xff]
    %v32 = vld [vmem:[#allocation2 + $0x38] sm:$0xff]
    %v33 = vld [vmem:[#allocation2 + $0x40] sm:$0xf]
    %v34 = vld [vmem:[#allocation2 + $0x48] sm:$0xf]
    %v35 = vld [vmem:[#allocation2 + $0x50] sm:$0xf]
    %v36 = vld [vmem:[#allocation2 + $0x58] sm:$0xf]
    %v37 = vld [vmem:[#allocation2 + $0x60] sm:$0xff]
    %v38 = vld [vmem:[#allocation2 + $0x68] sm:$0xff]
    %v39 = vld [vmem:[#allocation2 + $0x70] sm:$0xff]
    %v40 = vld [vmem:[#allocation2 + $0x78] sm:$0xff]
    %v41 = vld [vmem:[#allocation2 + $0x80] sm:$0xff]
    %v42 = vld [vmem:[#allocation2 + $0x88] sm:$0xff]
    %v43 = vld [vmem:[#allocation2 + $0x90] sm:$0xff]
    %v44 = vld [vmem:[#allocation2 + $0x98] sm:$0xff]
    %v45 = vld [vmem:[#allocation2 + $0xa0] sm:$0xff]
    %v46 = vld [vmem:[#allocation2 + $0xa8] sm:$0xff]
    %v47 = vld [vmem:[#allocation2 + $0xb0] sm:$0xff]
    %v48 = vld [vmem:[#allocation2 + $0xb8] sm:$0xff]
    %v49 = vld [vmem:[#allocation2 + $0xc0] sm:$0xff]
    %v50 = vld [vmem:[#allocation2 + $0xc8] sm:$0xff]
    %v51 = vld [vmem:[#allocation2 + $0xd0] sm:$0xff]
    %v52 = vld [vmem:[#allocation2 + $0xd8] sm:$0xff]
    %v53 = vld [vmem:[#allocation2 + $0xe0] sm:$0xff]
    %v54 = vld [vmem:[#allocation2 + $0xe8] sm:$0xff]
    %v55 = vld [vmem:[#allocation2 + $0xf0] sm:$0xff]
    %v56 = vld [vmem:[#allocation2 + $0xf8] sm:$0xff]
    %v57 = vld [vmem:[#allocation2 + $0x100] sm:$0xff]
    %v58 = vld [vmem:[#allocation2 + $0x108] sm:$0xff]
    %v59 = vld [vmem:[#allocation2 + $0x110] sm:$0xff]
    %v60 = vld [vmem:[#allocation2 + $0x118] sm:$0xff]
    %v61 = vld [vmem:[#allocation2 + $0x120] sm:$0xff]
    %v62 = vld [vmem:[#allocation2 + $0x128] sm:$0xff]
    %v63 = vld [vmem:[#allocation2 + $0x130] sm:$0xff]
    %v64 = vld [vmem:[#allocation2 + $0x138] sm:$0xff]
    %v65 = vld [vmem:[#allocation2 + $0x140] sm:$0xff]
    %v66 = vld [vmem:[#allocation2 + $0x148] sm:$0xff]
    %v67 = vld [vmem:[#allocation2 + $0x150] sm:$0xff]
    %v68 = vld [vmem:[#allocation2 + $0x158] sm:$0xff]
    %v69 = vld [vmem:[#allocation2 + $0x160] sm:$0xff]
    %v70 = vld [vmem:[#allocation2 + $0x168] sm:$0xff]
    %v71 = vld [vmem:[#allocation2 + $0x170] sm:$0xff]
    %v72 = vld [vmem:[#allocation2 + $0x178] sm:$0xff]
    %v73 = vld [vmem:[#allocation2 + $0x180] sm:$0xff]
    %v74 = vld [vmem:[#allocation2 + $0x188] sm:$0xff]
    %v75 = vld [vmem:[#allocation2 + $0x190] sm:$0xff]
    %v76 = vld [vmem:[#allocation2 + $0x198] sm:$0xff]
    %v77 = vld [vmem:[#allocation2 + $0x1a0] sm:$0xff]
    %v78 = vld [vmem:[#allocation2 + $0x1a8] sm:$0xff]
    %v79 = vld [vmem:[#allocation2 + $0x1b0] sm:$0xff]
    %v80 = vld [vmem:[#allocation2 + $0x1b8] sm:$0xff]
    %v81 = vld [vmem:[#allocation2 + $0x1c0] sm:$0xff]
    %v82 = vld [vmem:[#allocation2 + $0x1c8] sm:$0xff]
    %v83 = vld [vmem:[#allocation2 + $0x1d0] sm:$0xff]
    %v84 = vld [vmem:[#allocation2 + $0x1d8] sm:$0xff]
    %v85 = vld [vmem:[#allocation2 + $0x1e0] sm:$0xff]
    %v86 = vld [vmem:[#allocation2 + $0x1e8] sm:$0xff]
    %v87 = vld [vmem:[#allocation2 + $0x1f0] sm:$0xff]
    %v88 = vld [vmem:[#allocation2 + $0x1f8] sm:$0xff]
    %v89 = vld [vmem:[#allocation2 + $0x200] sm:$0xff]
    %v90 = vld [vmem:[#allocation2 + $0x208] sm:$0xff]
    %v91 = vld [vmem:[#allocation2 + $0x210] sm:$0xff]
    %v92 = vld [vmem:[#allocation2 + $0x218] sm:$0xff]
    %v93 = vld [vmem:[#allocation2 + $0x220] sm:$0xff]
    %v94 = vld [vmem:[#allocation2 + $0x228] sm:$0xff]
    %v95 = vld [vmem:[#allocation2 + $0x230] sm:$0xff]
    %v96 = vld [vmem:[#allocation2 + $0x238] sm:$0xff]
    %v97 = vld [vmem:[#allocation2 + $0x240] sm:$0xff]
    %v98 = vld [vmem:[#allocation2 + $0x248] sm:$0xff]
    %v99 = vld [vmem:[#allocation2 + $0x250] sm:$0xff]
    %v100 = vld [vmem:[#allocation2 + $0x258] sm:$0xff]
    %v101 = vld [vmem:[#allocation2 + $0x260] sm:$0xff]
    %v102 = vld [vmem:[#allocation2 + $0x280] sm:$0xff]
    %v103 = vld [vmem:[#allocation2 + $0x2a0] sm:$0xff]
    %v104 = vld [vmem:[#allocation2 + $0x2c0] sm:$0xff]
    %v105 = vld [vmem:[#allocation2 + $0x2e0] sm:$0xff]
    %v106 = vld [vmem:[#allocation2 + $0x300] sm:$0xff]
    %v107 = vld [vmem:[#allocation2 + $0x320] sm:$0xff]
    %v108 = vld [vmem:[#allocation2 + $0x340] sm:$0xff]
    %v109 = vld [vmem:[#allocation2 + $0x360] sm:$0xff]
    %v110 = vld [vmem:[#allocation2 + $0x380] sm:$0xff]
    %v111 = vld [vmem:[#allocation2 + $0x3a0] sm:$0xff]
    %v112 = vld [vmem:[#allocation2 + $0x3c0] sm:$0xff]
    %v113 = vld [vmem:[#allocation2 + $0x3e0] sm:$0xff]
    %v114 = vld [vmem:[#allocation2 + $0x400] sm:$0xff]
    %v115 = vld [vmem:[#allocation2 + $0x420] sm:$0xff]
    %v116 = vld [vmem:[#allocation2 + $0x440] sm:$0xff]
    %v117 = vld [vmem:[#allocation2 + $0x268] sm:$0xff]
    %v118 = vld [vmem:[#allocation2 + $0x288] sm:$0xff]
    %v119 = vld [vmem:[#allocation2 + $0x2a8] sm:$0xff]
    %v120 = vld [vmem:[#allocation2 + $0x2c8] sm:$0xff]
    %v121 = vld [vmem:[#allocation2 + $0x2e8] sm:$0xff]
    %v122 = vld [vmem:[#allocation2 + $0x308] sm:$0xff]
    %v123 = vld [vmem:[#allocation2 + $0x328] sm:$0xff]
    %v124 = vld [vmem:[#allocation2 + $0x348] sm:$0xff]
    %v125 = vld [vmem:[#allocation2 + $0x368] sm:$0xff]
    %v126 = vld [vmem:[#allocation2 + $0x388] sm:$0xff]
    %v127 = vld [vmem:[#allocation2 + $0x3a8] sm:$0xff]
    %v128 = vld [vmem:[#allocation2 + $0x3c8] sm:$0xff]
    %v129 = vld [vmem:[#allocation2 + $0x3e8] sm:$0xff]
    %v130 = vld [vmem:[#allocation2 + $0x408] sm:$0xff]
    %v131 = vld [vmem:[#allocation2 + $0x428] sm:$0xff]
    %v132 = vld [vmem:[#allocation2 + $0x448] sm:$0xff]
    %v133 = vld [vmem:[#allocation2 + $0x270] sm:$0xff]
    %v134 = vld [vmem:[#allocation2 + $0x290] sm:$0xff]
    %v135 = vld [vmem:[#allocation2 + $0x2b0] sm:$0xf]
    %v136 = vld [vmem:[#allocation2 + $0x278] sm:$0xff]
    %v137 = vld [vmem:[#allocation2 + $0x298] sm:$0xff]
    %v138 = vld [vmem:[#allocation2 + $0x2b8] sm:$0xf]
    %s139 = scalar_lea.vmem [#allocation2], 1120
    %v140 = vld [vmem:[%s139] ss:$8 sm:$0xf]
    %v141 = vld [vmem:[#allocation2 + $0x461] ss:$0 sm:$0xff]
    %v142 = vld [vmem:[#allocation2 + $0x462] ss:$0 sm:$0xff]
    %v143 = vld [vmem:[#allocation2 + $0x463] ss:$0 sm:$0xff]
    %v144 = vld [vmem:[%s0] sm:$0xff]
    %146 = vrot.lane.b32.xlu0 %v144, 108
    %v147 = vpop.permute.xlu0 %146
    %148 = vrot.lane.b32.xlu0 %v144, 88
    %v149 = vpop.permute.xlu0 %148
    %150 = vrot.lane.b32.xlu0 %v144, 68
    %v151 = vpop.permute.xlu0 %150
    %152 = vrot.lane.b32.xlu0 %v144, 48
    %v153 = vpop.permute.xlu0 %152
    %vm154 = vcmask 162816
    %v155 = vsel %vm154, %v144, 0
    %v157 = vsel %vm154, %v147, 0
    %v159 = vsel %vm154, %v149, 0
    %v161 = vsel %vm154, %v151, 0
    %v163 = vsel %vm154, %v153, 0
    %vm165 = vcmask 1043456
    %v167 = vsel %vm165, %v138, 0
    %169 = vmatprep.subr.mxu0 0.0
    %170 = vmatpush1.msra.mxu0 %v136
    %171 = vmatprep.subr.mxu0 0.0
    %172 = vmatpush1.msra.mxu0 %v137
    %173 = vmatprep.subr.mxu0 0.0
    %174 = vmatpush1.msra.mxu0 %v167
    %175 = vmatprep.subr.mxu0 0.0
    %176 = vmatpush1.msra.mxu0 0.0
    %177 = vmatprep.subr.mxu0 0.0
    %178 = vmatpush1.msra.mxu0 0.0
    %179 = vmatprep.subr.mxu0 0.0
    %180 = vmatpush1.msra.mxu0 0.0
    %181 = vmatprep.subr.mxu0 0.0
    %182 = vmatpush1.msra.mxu0 0.0
    %183 = vmatprep.subr.mxu0 0.0
    %184 = vmatpush1.msra.mxu0 0.0
    %185 = vmatprep.subr.mxu0 0.0
    %186 = vmatpush1.msra.mxu0 0.0
    %187 = vmatprep.subr.mxu0 0.0
    %188 = vmatpush1.msra.mxu0 0.0
    %189 = vmatprep.subr.mxu0 0.0
    %190 = vmatpush1.msra.mxu0 0.0
    %191 = vmatprep.subr.mxu0 0.0
    %192 = vmatpush1.msra.mxu0 0.0
    %193 = vmatprep.subr.mxu0 0.0
    %194 = vmatpush1.msra.mxu0 0.0
    %195 = vmatprep.subr.mxu0 0.0
    %196 = vmatpush1.msra.mxu0 0.0
    %197 = vmatprep.subr.mxu0 0.0
    %198 = vmatpush1.msra.mxu0 0.0
    %199 = vmatprep.subr.mxu0 0.0
    %200 = vmatpush1.msra.mxu0 0.0
    %201 = vmatprep.subr.mxu0 0.0
    %202 = vmatpush1.msra.mxu0 0.0
    %203 = vmatprep.subr.mxu0 0.0
    %204 = vmatpush1.msra.mxu0 0.0
    %205 = vmatprep.subr.mxu0 0.0
    %206 = vmatpush1.msra.mxu0 0.0
    %207 = vmatprep.subr.mxu0 0.0
    %208 = vmatpush1.msra.mxu0 0.0
    %209 = vmatprep.subr.mxu0 0.0
    %210 = vmatpush1.msra.mxu0 0.0
    %211 = vmatprep.subr.mxu0 0.0
    %212 = vmatpush1.msra.mxu0 0.0
    %213 = vmatprep.subr.mxu0 0.0
    %214 = vmatpush1.msra.mxu0 0.0
    %215 = vmatprep.subr.mxu0 0.0
    %216 = vmatpush1.msra.mxu0 0.0
    %217 = vmatprep.subr.mxu0 0.0
    %218 = vmatpush1.msra.mxu0 0.0
    %219 = vmatprep.subr.mxu0 0.0
    %220 = vmatpush1.msra.mxu0 0.0
    %221 = vmatprep.subr.mxu0 0.0
    %222 = vmatpush1.msra.mxu0 0.0
    %223 = vmatprep.subr.mxu0 0.0
    %224 = vmatpush1.msra.mxu0 0.0
    %225 = vmatprep.subr.mxu0 0.0
    %226 = vmatpush1.msra.mxu0 0.0
    %227 = vmatprep.subr.mxu0 0.0
    %228 = vmatpush1.msra.mxu0 0.0
    %229 = vmatprep.subr.mxu0 0.0
    %230 = vmatpush1.msra.mxu0 0.0
    %231 = vmatprep.subr.mxu0 0.0
    %232 = vmatpush1.msra.mxu0 0.0
    %233 = vmatprep.mubr.f32.mxu0 0.0
    %234 = vmatmul.mubr.f32.gmra.mrb[0].mxu0 %v155
    %v235 = vpop.f32.mrb[0].mxu0
    %v236 = vadd.f32 %v141, %v235
    %v237 = vpop.f32.mrb[0].mxu0
    %238 = vmatprep.mubr.f32.mxu0 0.0
    %239 = vmatmul.mubr.f32.gmra.mrb[0].mxu0 %v157
    %v240 = vpop.f32.mrb[0].mxu0
    %v241 = vadd.f32 %v141, %v240
    %v242 = vpop.f32.mrb[0].mxu0
    %243 = vmatprep.mubr.f32.mxu0 0.0
    %244 = vmatmul.mubr.f32.gmra.mrb[0].mxu0 %v159
    %v245 = vpop.f32.mrb[0].mxu0
    %v246 = vadd.f32 %v141, %v245
    %v247 = vpop.f32.mrb[0].mxu0
    %248 = vmatprep.mubr.f32.mxu0 0.0
    %249 = vmatmul.mubr.f32.gmra.mrb[0].mxu0 %v161
    %v250 = vpop.f32.mrb[0].mxu0
    %v251 = vadd.f32 %v141, %v250
    %v252 = vpop.f32.mrb[0].mxu0
    %253 = vmatprep.mubr.f32.mxu0 0.0
    %254 = vmatmul.mubr.f32.gmra.mrb[0].mxu0 %v163
    %v255 = vpop.f32.mrb[0].mxu0
    %v256 = vadd.f32 %v141, %v255
    %v257 = vpop.f32.mrb[0].mxu0
    %258 = vdwg.mxu0
    %v259 = vmax.f32 %v236, 0.0
    %v260 = vmax.f32 %v241, 0.0
    %v261 = vmax.f32 %v246, 0.0
    %v262 = vmax.f32 %v251, 0.0
    %v263 = vmax.f32 %v256, 0.0
    %v265 = vlaneseq
    %v266 = vshrl.u32 %v265, 7
    %v267 = vsub.s32 0, %v266
    %v268 = vrot.slane %v140, %v267
    %v269 = vlaneseq
    %v270 = vshrl.u32 %v269, 7
    %v271 = vsub.s32 1, %v270
    %v272 = vrot.slane %v140, %v271
    %v273 = vlaneseq
    %v274 = vshrl.u32 %v273, 7
    %v275 = vsub.s32 2, %v274
    %v276 = vrot.slane %v140, %v275
    %v277 = vlaneseq
    %v278 = vshrl.u32 %v277, 7
    %v279 = vsub.s32 3, %v278
    %v280 = vrot.slane %v140, %v279
    %v286 = vsel %vm154, %v259, 0
    %v289 = vsel %vm154, %v260, 0
    %v292 = vsel %vm154, %v261, 0
    %v295 = vsel %vm154, %v262, 0
    %v298 = vsel %vm154, %v263, 0
    %v301 = vsel %vm165, %v33, 0
    %v304 = vsel %vm165, %v34, 0
    %v307 = vsel %vm165, %v35, 0
    %v310 = vsel %vm165, %v36, 0
    %312 = vmatprep.subr.mxu0 %v26
    %313 = vmatpush1.msra.mxu0 %v25
    %314 = vmatprep.subr.mxu0 %v30
    %315 = vmatpush1.msra.mxu0 %v29
    %316 = vmatprep.subr.mxu0 %v304
    %317 = vmatpush1.msra.mxu0 %v301
    %318 = vmatprep.subr.mxu0 0.0
    %319 = vmatpush1.msra.mxu0 0.0
    %320 = vmatprep.subr.mxu0 0.0
    %321 = vmatpush1.msra.mxu0 0.0
    %322 = vmatprep.subr.mxu0 0.0
    %323 = vmatpush1.msra.mxu0 0.0
    %324 = vmatprep.subr.mxu0 0.0
    %325 = vmatpush1.msra.mxu0 0.0
    %326 = vmatprep.subr.mxu0 0.0
    %327 = vmatpush1.msra.mxu0 0.0
    %328 = vmatprep.subr.mxu0 0.0
    %329 = vmatpush1.msra.mxu0 0.0
    %330 = vmatprep.subr.mxu0 0.0
    %331 = vmatpush1.msra.mxu0 0.0
    %332 = vmatprep.subr.mxu0 0.0
    %333 = vmatpush1.msra.mxu0 0.0
    %334 = vmatprep.subr.mxu0 0.0
    %335 = vmatpush1.msra.mxu0 0.0
    %336 = vmatprep.subr.mxu0 0.0
    %337 = vmatpush1.msra.mxu0 0.0
    %338 = vmatprep.subr.mxu0 0.0
    %339 = vmatpush1.msra.mxu0 0.0
    %340 = vmatprep.subr.mxu0 0.0
    %341 = vmatpush1.msra.mxu0 0.0
    %342 = vmatprep.subr.mxu0 0.0
    %343 = vmatpush1.msra.mxu0 0.0
    %344 = vmatprep.subr.mxu0 0.0
    %345 = vmatpush1.msra.mxu0 0.0
    %346 = vmatprep.subr.mxu0 0.0
    %347 = vmatpush1.msra.mxu0 0.0
    %348 = vmatprep.subr.mxu0 0.0
    %349 = vmatpush1.msra.mxu0 0.0
    %350 = vmatprep.subr.mxu0 0.0
    %351 = vmatpush1.msra.mxu0 0.0
    %352 = vmatprep.subr.mxu0 0.0
    %353 = vmatpush1.msra.mxu0 0.0
    %354 = vmatprep.subr.mxu0 0.0
    %355 = vmatpush1.msra.mxu0 0.0
    %356 = vmatprep.subr.mxu0 0.0
    %357 = vmatpush1.msra.mxu0 0.0
    %358 = vmatprep.subr.mxu0 0.0
    %359 = vmatpush1.msra.mxu0 0.0
    %360 = vmatprep.subr.mxu0 0.0
    %361 = vmatpush1.msra.mxu0 0.0
    %362 = vmatprep.subr.mxu0 0.0
    %363 = vmatpush1.msra.mxu0 0.0
    %364 = vmatprep.subr.mxu0 0.0
    %365 = vmatpush1.msra.mxu0 0.0
    %366 = vmatprep.subr.mxu0 0.0
    %367 = vmatpush1.msra.mxu0 0.0
    %368 = vmatprep.subr.mxu0 0.0
    %369 = vmatpush1.msra.mxu0 0.0
    %370 = vmatprep.subr.mxu0 0.0
    %371 = vmatpush1.msra.mxu0 0.0
    %372 = vmatprep.subr.mxu0 0.0
    %373 = vmatpush1.msra.mxu0 0.0
    %374 = vmatprep.subr.mxu0 0.0
    %375 = vmatpush1.msra.mxu0 0.0
    %376 = vmatprep.mubr.f32.mxu0 0.0
    %377 = vmatmul.mubr.f32.gmra.mrb[0].mxu0 %v286
    %v378 = vpop.f32.mrb[0].mxu0
    %v379 = vadd.f32 %v268, %v378
    %v380 = vpop.f32.mrb[0].mxu0
    %v381 = vadd.f32 %v272, %v380
    %382 = vmatprep.mubr.f32.mxu0 0.0
    %383 = vmatmul.mubr.f32.gmra.mrb[0].mxu0 %v289
    %v384 = vpop.f32.mrb[0].mxu0
    %v385 = vadd.f32 %v268, %v384
    %v386 = vpop.f32.mrb[0].mxu0
    %v387 = vadd.f32 %v272, %v386
    %388 = vmatprep.mubr.f32.mxu0 0.0
    %389 = vmatmul.mubr.f32.gmra.mrb[0].mxu0 %v292
    %v390 = vpop.f32.mrb[0].mxu0
    %v391 = vadd.f32 %v268, %v390
    %v392 = vpop.f32.mrb[0].mxu0
    %v393 = vadd.f32 %v272, %v392
    %394 = vmatprep.mubr.f32.mxu0 0.0
    %395 = vmatmul.mubr.f32.gmra.mrb[0].mxu0 %v295
    %v396 = vpop.f32.mrb[0].mxu0
    %v397 = vadd.f32 %v268, %v396
    %v398 = vpop.f32.mrb[0].mxu0
    %v399 = vadd.f32 %v272, %v398
    %400 = vmatprep.mubr.f32.mxu0 0.0
    %401 = vmatmul.mubr.f32.gmra.mrb[0].mxu0 %v298
    %v402 = vpop.f32.mrb[0].mxu0
    %v403 = vadd.f32 %v268, %v402
    %v404 = vpop.f32.mrb[0].mxu0
    %v405 = vadd.f32 %v272, %v404
    %406 = vdwg.mxu0
    %407 = vmatprep.subr.mxu0 %v28
    %408 = vmatpush1.msra.mxu0 %v27
    %409 = vmatprep.subr.mxu0 %v32
    %410 = vmatpush1.msra.mxu0 %v31
    %411 = vmatprep.subr.mxu0 %v310
    %412 = vmatpush1.msra.mxu0 %v307
    %413 = vmatprep.subr.mxu0 0.0
    %414 = vmatpush1.msra.mxu0 0.0
    %415 = vmatprep.subr.mxu0 0.0
    %416 = vmatpush1.msra.mxu0 0.0
    %417 = vmatprep.subr.mxu0 0.0
    %418 = vmatpush1.msra.mxu0 0.0
    %419 = vmatprep.subr.mxu0 0.0
    %420 = vmatpush1.msra.mxu0 0.0
    %421 = vmatprep.subr.mxu0 0.0
    %422 = vmatpush1.msra.mxu0 0.0
    %423 = vmatprep.subr.mxu0 0.0
    %424 = vmatpush1.msra.mxu0 0.0
    %425 = vmatprep.subr.mxu0 0.0
    %426 = vmatpush1.msra.mxu0 0.0
    %427 = vmatprep.subr.mxu0 0.0
    %428 = vmatpush1.msra.mxu0 0.0
    %429 = vmatprep.subr.mxu0 0.0
    %430 = vmatpush1.msra.mxu0 0.0
    %431 = vmatprep.subr.mxu0 0.0
    %432 = vmatpush1.msra.mxu0 0.0
    %433 = vmatprep.subr.mxu0 0.0
    %434 = vmatpush1.msra.mxu0 0.0
    %435 = vmatprep.subr.mxu0 0.0
    %436 = vmatpush1.msra.mxu0 0.0
    %437 = vmatprep.subr.mxu0 0.0
    %438 = vmatpush1.msra.mxu0 0.0
    %439 = vmatprep.subr.mxu0 0.0
    %440 = vmatpush1.msra.mxu0 0.0
    %441 = vmatprep.subr.mxu0 0.0
    %442 = vmatpush1.msra.mxu0 0.0
    %443 = vmatprep.subr.mxu0 0.0
    %444 = vmatpush1.msra.mxu0 0.0
    %445 = vmatprep.subr.mxu0 0.0
    %446 = vmatpush1.msra.mxu0 0.0
    %447 = vmatprep.subr.mxu0 0.0
    %448 = vmatpush1.msra.mxu0 0.0
    %449 = vmatprep.subr.mxu0 0.0
    %450 = vmatpush1.msra.mxu0 0.0
    %451 = vmatprep.subr.mxu0 0.0
    %452 = vmatpush1.msra.mxu0 0.0
    %453 = vmatprep.subr.mxu0 0.0
    %454 = vmatpush1.msra.mxu0 0.0
    %455 = vmatprep.subr.mxu0 0.0
    %456 = vmatpush1.msra.mxu0 0.0
    %457 = vmatprep.subr.mxu0 0.0
    %458 = vmatpush1.msra.mxu0 0.0
    %459 = vmatprep.subr.mxu0 0.0
    %460 = vmatpush1.msra.mxu0 0.0
    %461 = vmatprep.subr.mxu0 0.0
    %462 = vmatpush1.msra.mxu0 0.0
    %463 = vmatprep.subr.mxu0 0.0
    %464 = vmatpush1.msra.mxu0 0.0
    %465 = vmatprep.subr.mxu0 0.0
    %466 = vmatpush1.msra.mxu0 0.0
    %467 = vmatprep.subr.mxu0 0.0
    %468 = vmatpush1.msra.mxu0 0.0
    %469 = vmatprep.subr.mxu0 0.0
    %470 = vmatpush1.msra.mxu0 0.0
    %471 = vmatprep.mubr.f32.mxu0 0.0
    %472 = vmatmul.mubr.f32.gmra.mrb[0].mxu0 %v286
    %v473 = vpop.f32.mrb[0].mxu0
    %v474 = vadd.f32 %v276, %v473
    %v475 = vpop.f32.mrb[0].mxu0
    %v476 = vadd.f32 %v280, %v475
    %477 = vmatprep.mubr.f32.mxu0 0.0
    %478 = vmatmul.mubr.f32.gmra.mrb[0].mxu0 %v289
    %v479 = vpop.f32.mrb[0].mxu0
    %v480 = vadd.f32 %v276, %v479
    %v481 = vpop.f32.mrb[0].mxu0
    %v482 = vadd.f32 %v280, %v481
    %483 = vmatprep.mubr.f32.mxu0 0.0
    %484 = vmatmul.mubr.f32.gmra.mrb[0].mxu0 %v292
    %v485 = vpop.f32.mrb[0].mxu0
    %v486 = vadd.f32 %v276, %v485
    %v487 = vpop.f32.mrb[0].mxu0
    %v488 = vadd.f32 %v280, %v487
    %489 = vmatprep.mubr.f32.mxu0 0.0
    %490 = vmatmul.mubr.f32.gmra.mrb[0].mxu0 %v295
    %v491 = vpop.f32.mrb[0].mxu0
    %v492 = vadd.f32 %v276, %v491
    %v493 = vpop.f32.mrb[0].mxu0
    %v494 = vadd.f32 %v280, %v493
    %495 = vmatprep.mubr.f32.mxu0 0.0
    %496 = vmatmul.mubr.f32.gmra.mrb[0].mxu0 %v298
    %v497 = vpop.f32.mrb[0].mxu0
    %v498 = vadd.f32 %v276, %v497
    %v499 = vpop.f32.mrb[0].mxu0
    %v500 = vadd.f32 %v280, %v499
    %501 = vdwg.mxu0
    %v502 = vxor.u32 %v379, 2147483648
    %v503 = vmul.f32 %v502, 1.442695
    %v504 = vpow.pop %v503
    %v505 = vadd.f32 %v504, 1.0
    %v506 = vrcp.pop %v505
    %v507 = vmul.f32 1.0, %v506
    %v508 = vxor.u32 %v381, 2147483648
    %v509 = vmul.f32 %v508, 1.442695
    %v510 = vpow.pop %v509
    %v511 = vadd.f32 %v510, 1.0
    %v512 = vrcp.pop %v511
    %v513 = vmul.f32 1.0, %v512
    %v514 = vtanh.pop %v474
    %v515 = vxor.u32 %v476, 2147483648
    %v516 = vmul.f32 %v515, 1.442695
    %v517 = vpow.pop %v516
    %v518 = vadd.f32 %v517, 1.0
    %v519 = vrcp.pop %v518
    %v520 = vmul.f32 1.0, %v519
    %v521 = vmul.f32 %v513, 0.0
    %v522 = vmul.f32 %v507, %v514
    %v523 = vadd.f32 %v521, %v522
    %v524 = vtanh.pop %v523
    %v525 = vmul.f32 %v520, %v524
    %526 = vmatprep.subr.mxu0 %v38
    %527 = vmatpush1.msra.mxu0 %v37
    %528 = vmatprep.subr.mxu0 %v42
    %529 = vmatpush1.msra.mxu0 %v41
    %530 = vmatprep.subr.mxu0 %v46
    %531 = vmatpush1.msra.mxu0 %v45
    %532 = vmatprep.subr.mxu0 %v50
    %533 = vmatpush1.msra.mxu0 %v49
    %534 = vmatprep.subr.mxu0 %v54
    %535 = vmatpush1.msra.mxu0 %v53
    %536 = vmatprep.subr.mxu0 %v58
    %537 = vmatpush1.msra.mxu0 %v57
    %538 = vmatprep.subr.mxu0 %v62
    %539 = vmatpush1.msra.mxu0 %v61
    %540 = vmatprep.subr.mxu0 %v66
    %541 = vmatpush1.msra.mxu0 %v65
    %542 = vmatprep.subr.mxu0 %v70
    %543 = vmatpush1.msra.mxu0 %v69
    %544 = vmatprep.subr.mxu0 %v74
    %545 = vmatpush1.msra.mxu0 %v73
    %546 = vmatprep.subr.mxu0 %v78
    %547 = vmatpush1.msra.mxu0 %v77
    %548 = vmatprep.subr.mxu0 %v82
    %549 = vmatpush1.msra.mxu0 %v81
    %550 = vmatprep.subr.mxu0 %v86
    %551 = vmatpush1.msra.mxu0 %v85
    %552 = vmatprep.subr.mxu0 %v90
    %553 = vmatpush1.msra.mxu0 %v89
    %554 = vmatprep.subr.mxu0 %v94
    %555 = vmatpush1.msra.mxu0 %v93
    %556 = vmatprep.subr.mxu0 %v98
    %557 = vmatpush1.msra.mxu0 %v97
    %558 = vmatprep.subr.mxu0 0.0
    %559 = vmatpush1.msra.mxu0 0.0
    %560 = vmatprep.subr.mxu0 0.0
    %561 = vmatpush1.msra.mxu0 0.0
    %562 = vmatprep.subr.mxu0 0.0
    %563 = vmatpush1.msra.mxu0 0.0
    %564 = vmatprep.subr.mxu0 0.0
    %565 = vmatpush1.msra.mxu0 0.0
    %566 = vmatprep.subr.mxu0 0.0
    %567 = vmatpush1.msra.mxu0 0.0
    %568 = vmatprep.subr.mxu0 0.0
    %569 = vmatpush1.msra.mxu0 0.0
    %570 = vmatprep.subr.mxu0 0.0
    %571 = vmatpush1.msra.mxu0 0.0
    %572 = vmatprep.subr.mxu0 0.0
    %573 = vmatpush1.msra.mxu0 0.0
    %574 = vmatprep.subr.mxu0 0.0
    %575 = vmatpush1.msra.mxu0 0.0
    %576 = vmatprep.subr.mxu0 0.0
    %577 = vmatpush1.msra.mxu0 0.0
    %578 = vmatprep.subr.mxu0 0.0
    %579 = vmatpush1.msra.mxu0 0.0
    %580 = vmatprep.subr.mxu0 0.0
    %581 = vmatpush1.msra.mxu0 0.0
    %582 = vmatprep.subr.mxu0 0.0
    %583 = vmatpush1.msra.mxu0 0.0
    %584 = vmatprep.subr.mxu0 0.0
    %585 = vmatpush1.msra.mxu0 0.0
    %586 = vmatprep.subr.mxu0 0.0
    %587 = vmatpush1.msra.mxu0 0.0
    %588 = vmatprep.subr.mxu0 0.0
    %589 = vmatpush1.msra.mxu0 0.0
    %590 = vmatprep.mubr.f32.mxu0 0.0
    %591 = vmatmul.mubr.f32.gmra.mrb[0].mxu0 %v525
    %v592 = vpop.f32.mrb[0].mxu0
    %v593 = vadd.f32 0.0, %v592
    %v594 = vpop.f32.mrb[0].mxu0
    %v595 = vadd.f32 0.0, %v594
    %596 = vdwg.mxu0
    %597 = vmatprep.subr.mxu0 %v40
    %598 = vmatpush1.msra.mxu0 %v39
    %599 = vmatprep.subr.mxu0 %v44
    %600 = vmatpush1.msra.mxu0 %v43
    %601 = vmatprep.subr.mxu0 %v48
    %602 = vmatpush1.msra.mxu0 %v47
    %603 = vmatprep.subr.mxu0 %v52
    %604 = vmatpush1.msra.mxu0 %v51
    %605 = vmatprep.subr.mxu0 %v56
    %606 = vmatpush1.msra.mxu0 %v55
    %607 = vmatprep.subr.mxu0 %v60
    %608 = vmatpush1.msra.mxu0 %v59
    %609 = vmatprep.subr.mxu0 %v64
    %610 = vmatpush1.msra.mxu0 %v63
    %611 = vmatprep.subr.mxu0 %v68
    %612 = vmatpush1.msra.mxu0 %v67
    %613 = vmatprep.subr.mxu0 %v72
    %614 = vmatpush1.msra.mxu0 %v71
    %615 = vmatprep.subr.mxu0 %v76
    %616 = vmatpush1.msra.mxu0 %v75
    %617 = vmatprep.subr.mxu0 %v80
    %618 = vmatpush1.msra.mxu0 %v79
    %619 = vmatprep.subr.mxu0 %v84
    %620 = vmatpush1.msra.mxu0 %v83
    %621 = vmatprep.subr.mxu0 %v88
    %622 = vmatpush1.msra.mxu0 %v87
    %623 = vmatprep.subr.mxu0 %v92
    %624 = vmatpush1.msra.mxu0 %v91
    %625 = vmatprep.subr.mxu0 %v96
    %626 = vmatpush1.msra.mxu0 %v95
    %627 = vmatprep.subr.mxu0 %v100
    %628 = vmatpush1.msra.mxu0 %v99
    %629 = vmatprep.subr.mxu0 0.0
    %630 = vmatpush1.msra.mxu0 0.0
    %631 = vmatprep.subr.mxu0 0.0
    %632 = vmatpush1.msra.mxu0 0.0
    %633 = vmatprep.subr.mxu0 0.0
    %634 = vmatpush1.msra.mxu0 0.0
    %635 = vmatprep.subr.mxu0 0.0
    %636 = vmatpush1.msra.mxu0 0.0
    %637 = vmatprep.subr.mxu0 0.0
    %638 = vmatpush1.msra.mxu0 0.0
    %639 = vmatprep.subr.mxu0 0.0
    %640 = vmatpush1.msra.mxu0 0.0
    %641 = vmatprep.subr.mxu0 0.0
    %642 = vmatpush1.msra.mxu0 0.0
    %643 = vmatprep.subr.mxu0 0.0
    %644 = vmatpush1.msra.mxu0 0.0
    %645 = vmatprep.subr.mxu0 0.0
    %646 = vmatpush1.msra.mxu0 0.0
    %647 = vmatprep.subr.mxu0 0.0
    %648 = vmatpush1.msra.mxu0 0.0
    %649 = vmatprep.subr.mxu0 0.0
    %650 = vmatpush1.msra.mxu0 0.0
    %651 = vmatprep.subr.mxu0 0.0
    %652 = vmatpush1.msra.mxu0 0.0
    %653 = vmatprep.subr.mxu0 0.0
    %654 = vmatpush1.msra.mxu0 0.0
    %655 = vmatprep.subr.mxu0 0.0
    %656 = vmatpush1.msra.mxu0 0.0
    %657 = vmatprep.subr.mxu0 0.0
    %658 = vmatpush1.msra.mxu0 0.0
    %659 = vmatprep.subr.mxu0 0.0
    %660 = vmatpush1.msra.mxu0 0.0
    %661 = vmatprep.mubr.f32.mxu0 0.0
    %662 = vmatmul.mubr.f32.gmra.mrb[0].mxu0 %v525
    %v663 = vpop.f32.mrb[0].mxu0
    %v664 = vadd.f32 0.0, %v663
    %v665 = vpop.f32.mrb[0].mxu0
    %v666 = vadd.f32 0.0, %v665
    %667 = vdwg.mxu0
    %v668 = vadd.f32 %v385, %v593
    %v669 = vadd.f32 %v387, %v595
    %v670 = vadd.f32 %v480, %v664
    %v671 = vadd.f32 %v482, %v666
    %v672 = vxor.u32 %v668, 2147483648
    %v673 = vmul.f32 %v672, 1.442695
    %v674 = vpow.pop %v673
    %v675 = vadd.f32 %v674, 1.0
    %v676 = vrcp.pop %v675
    %v677 = vmul.f32 1.0, %v676
    %v678 = vxor.u32 %v669, 2147483648
    %v679 = vmul.f32 %v678, 1.442695
    %v680 = vpow.pop %v679
    %v681 = vadd.f32 %v680, 1.0
    %v682 = vrcp.pop %v681
    %v683 = vmul.f32 1.0, %v682
    %v684 = vtanh.pop %v670
    %v685 = vxor.u32 %v671, 2147483648
    %v686 = vmul.f32 %v685, 1.442695
    %v687 = vpow.pop %v686
    %v688 = vadd.f32 %v687, 1.0
    %v689 = vrcp.pop %v688
    %v690 = vmul.f32 1.0, %v689
    %v691 = vmul.f32 %v683, %v523
    %v692 = vmul.f32 %v677, %v684
    %v693 = vadd.f32 %v691, %v692
    %v694 = vtanh.pop %v693
    %v695 = vmul.f32 %v690, %v694
    %696 = vmatprep.subr.mxu0 %v38
    %697 = vmatpush1.msra.mxu0 %v37
    %698 = vmatprep.subr.mxu0 %v42
    %699 = vmatpush1.msra.mxu0 %v41
    %700 = vmatprep.subr.mxu0 %v46
    %701 = vmatpush1.msra.mxu0 %v45
    %702 = vmatprep.subr.mxu0 %v50
    %703 = vmatpush1.msra.mxu0 %v49
    %704 = vmatprep.subr.mxu0 %v54
    %705 = vmatpush1.msra.mxu0 %v53
    %706 = vmatprep.subr.mxu0 %v58
    %707 = vmatpush1.msra.mxu0 %v57
    %708 = vmatprep.subr.mxu0 %v62
    %709 = vmatpush1.msra.mxu0 %v61
    %710 = vmatprep.subr.mxu0 %v66
    %711 = vmatpush1.msra.mxu0 %v65
    %712 = vmatprep.subr.mxu0 %v70
    %713 = vmatpush1.msra.mxu0 %v69
    %714 = vmatprep.subr.mxu0 %v74
    %715 = vmatpush1.msra.mxu0 %v73
    %716 = vmatprep.subr.mxu0 %v78
    %717 = vmatpush1.msra.mxu0 %v77
    %718 = vmatprep.subr.mxu0 %v82
    %719 = vmatpush1.msra.mxu0 %v81
    %720 = vmatprep.subr.mxu0 %v86
    %721 = vmatpush1.msra.mxu0 %v85
    %722 = vmatprep.subr.mxu0 %v90
    %723 = vmatpush1.msra.mxu0 %v89
    %724 = vmatprep.subr.mxu0 %v94
    %725 = vmatpush1.msra.mxu0 %v93
    %726 = vmatprep.subr.mxu0 %v98
    %727 = vmatpush1.msra.mxu0 %v97
    %728 = vmatprep.subr.mxu0 0.0
    %729 = vmatpush1.msra.mxu0 0.0
    %730 = vmatprep.subr.mxu0 0.0
    %731 = vmatpush1.msra.mxu0 0.0
    %732 = vmatprep.subr.mxu0 0.0
    %733 = vmatpush1.msra.mxu0 0.0
    %734 = vmatprep.subr.mxu0 0.0
    %735 = vmatpush1.msra.mxu0 0.0
    %736 = vmatprep.subr.mxu0 0.0
    %737 = vmatpush1.msra.mxu0 0.0
    %738 = vmatprep.subr.mxu0 0.0
    %739 = vmatpush1.msra.mxu0 0.0
    %740 = vmatprep.subr.mxu0 0.0
    %741 = vmatpush1.msra.mxu0 0.0
    %742 = vmatprep.subr.mxu0 0.0
    %743 = vmatpush1.msra.mxu0 0.0
    %744 = vmatprep.subr.mxu0 0.0
    %745 = vmatpush1.msra.mxu0 0.0
    %746 = vmatprep.subr.mxu0 0.0
    %747 = vmatpush1.msra.mxu0 0.0
    %748 = vmatprep.subr.mxu0 0.0
    %749 = vmatpush1.msra.mxu0 0.0
    %750 = vmatprep.subr.mxu0 0.0
    %751 = vmatpush1.msra.mxu0 0.0
    %752 = vmatprep.subr.mxu0 0.0
    %753 = vmatpush1.msra.mxu0 0.0
    %754 = vmatprep.subr.mxu0 0.0
    %755 = vmatpush1.msra.mxu0 0.0
    %756 = vmatprep.subr.mxu0 0.0
    %757 = vmatpush1.msra.mxu0 0.0
    %758 = vmatprep.subr.mxu0 0.0
    %759 = vmatpush1.msra.mxu0 0.0
    %760 = vmatprep.mubr.f32.mxu0 0.0
    %761 = vmatmul.mubr.f32.gmra.mrb[0].mxu0 %v695
    %v762 = vpop.f32.mrb[0].mxu0
    %v763 = vadd.f32 0.0, %v762
    %v764 = vpop.f32.mrb[0].mxu0
    %v765 = vadd.f32 0.0, %v764
    %766 = vdwg.mxu0
    %767 = vmatprep.subr.mxu0 %v40
    %768 = vmatpush1.msra.mxu0 %v39
    %769 = vmatprep.subr.mxu0 %v44
    %770 = vmatpush1.msra.mxu0 %v43
    %771 = vmatprep.subr.mxu0 %v48
    %772 = vmatpush1.msra.mxu0 %v47
    %773 = vmatprep.subr.mxu0 %v52
    %774 = vmatpush1.msra.mxu0 %v51
    %775 = vmatprep.subr.mxu0 %v56
    %776 = vmatpush1.msra.mxu0 %v55
    %777 = vmatprep.subr.mxu0 %v60
    %778 = vmatpush1.msra.mxu0 %v59
    %779 = vmatprep.subr.mxu0 %v64
    %780 = vmatpush1.msra.mxu0 %v63
    %781 = vmatprep.subr.mxu0 %v68
    %782 = vmatpush1.msra.mxu0 %v67
    %783 = vmatprep.subr.mxu0 %v72
    %784 = vmatpush1.msra.mxu0 %v71
    %785 = vmatprep.subr.mxu0 %v76
    %786 = vmatpush1.msra.mxu0 %v75
    %787 = vmatprep.subr.mxu0 %v80
    %788 = vmatpush1.msra.mxu0 %v79
    %789 = vmatprep.subr.mxu0 %v84
    %790 = vmatpush1.msra.mxu0 %v83
    %791 = vmatprep.subr.mxu0 %v88
    %792 = vmatpush1.msra.mxu0 %v87
    %793 = vmatprep.subr.mxu0 %v92
    %794 = vmatpush1.msra.mxu0 %v91
    %795 = vmatprep.subr.mxu0 %v96
    %796 = vmatpush1.msra.mxu0 %v95
    %797 = vmatprep.subr.mxu0 %v100
    %798 = vmatpush1.msra.mxu0 %v99
    %799 = vmatprep.subr.mxu0 0.0
    %800 = vmatpush1.msra.mxu0 0.0
    %801 = vmatprep.subr.mxu0 0.0
    %802 = vmatpush1.msra.mxu0 0.0
    %803 = vmatprep.subr.mxu0 0.0
    %804 = vmatpush1.msra.mxu0 0.0
    %805 = vmatprep.subr.mxu0 0.0
    %806 = vmatpush1.msra.mxu0 0.0
    %807 = vmatprep.subr.mxu0 0.0
    %808 = vmatpush1.msra.mxu0 0.0
    %809 = vmatprep.subr.mxu0 0.0
    %810 = vmatpush1.msra.mxu0 0.0
    %811 = vmatprep.subr.mxu0 0.0
    %812 = vmatpush1.msra.mxu0 0.0
    %813 = vmatprep.subr.mxu0 0.0
    %814 = vmatpush1.msra.mxu0 0.0
    %815 = vmatprep.subr.mxu0 0.0
    %816 = vmatpush1.msra.mxu0 0.0
    %817 = vmatprep.subr.mxu0 0.0
    %818 = vmatpush1.msra.mxu0 0.0
    %819 = vmatprep.subr.mxu0 0.0
    %820 = vmatpush1.msra.mxu0 0.0
    %821 = vmatprep.subr.mxu0 0.0
    %822 = vmatpush1.msra.mxu0 0.0
    %823 = vmatprep.subr.mxu0 0.0
    %824 = vmatpush1.msra.mxu0 0.0
    %825 = vmatprep.subr.mxu0 0.0
    %826 = vmatpush1.msra.mxu0 0.0
    %827 = vmatprep.subr.mxu0 0.0
    %828 = vmatpush1.msra.mxu0 0.0
    %829 = vmatprep.subr.mxu0 0.0
    %830 = vmatpush1.msra.mxu0 0.0
    %831 = vmatprep.mubr.f32.mxu0 0.0
    %832 = vmatmul.mubr.f32.gmra.mrb[0].mxu0 %v695
    %v833 = vpop.f32.mrb[0].mxu0
    %v834 = vadd.f32 0.0, %v833
    %v835 = vpop.f32.mrb[0].mxu0
    %v836 = vadd.f32 0.0, %v835
    %837 = vdwg.mxu0
    %v838 = vadd.f32 %v391, %v763
    %v839 = vadd.f32 %v393, %v765
    %v840 = vadd.f32 %v486, %v834
    %v841 = vadd.f32 %v488, %v836
    %v842 = vxor.u32 %v838, 2147483648
    %v843 = vmul.f32 %v842, 1.442695
    %v844 = vpow.pop %v843
    %v845 = vadd.f32 %v844, 1.0
    %v846 = vrcp.pop %v845
    %v847 = vmul.f32 1.0, %v846
    %v848 = vxor.u32 %v839, 2147483648
    %v849 = vmul.f32 %v848, 1.442695
    %v850 = vpow.pop %v849
    %v851 = vadd.f32 %v850, 1.0
    %v852 = vrcp.pop %v851
    %v853 = vmul.f32 1.0, %v852
    %v854 = vtanh.pop %v840
    %v855 = vxor.u32 %v841, 2147483648
    %v856 = vmul.f32 %v855, 1.442695
    %v857 = vpow.pop %v856
    %v858 = vadd.f32 %v857, 1.0
    %v859 = vrcp.pop %v858
    %v860 = vmul.f32 1.0, %v859
    %v861 = vmul.f32 %v853, %v693
    %v862 = vmul.f32 %v847, %v854
    %v863 = vadd.f32 %v861, %v862
    %v864 = vtanh.pop %v863
    %v865 = vmul.f32 %v860, %v864
    %866 = vmatprep.subr.mxu0 %v38
    %867 = vmatpush1.msra.mxu0 %v37
    %868 = vmatprep.subr.mxu0 %v42
    %869 = vmatpush1.msra.mxu0 %v41
    %870 = vmatprep.subr.mxu0 %v46
    %871 = vmatpush1.msra.mxu0 %v45
    %872 = vmatprep.subr.mxu0 %v50
    %873 = vmatpush1.msra.mxu0 %v49
    %874 = vmatprep.subr.mxu0 %v54
    %875 = vmatpush1.msra.mxu0 %v53
    %876 = vmatprep.subr.mxu0 %v58
    %877 = vmatpush1.msra.mxu0 %v57
    %878 = vmatprep.subr.mxu0 %v62
    %879 = vmatpush1.msra.mxu0 %v61
    %880 = vmatprep.subr.mxu0 %v66
    %881 = vmatpush1.msra.mxu0 %v65
    %882 = vmatprep.subr.mxu0 %v70
    %883 = vmatpush1.msra.mxu0 %v69
    %884 = vmatprep.subr.mxu0 %v74
    %885 = vmatpush1.msra.mxu0 %v73
    %886 = vmatprep.subr.mxu0 %v78
    %887 = vmatpush1.msra.mxu0 %v77
    %888 = vmatprep.subr.mxu0 %v82
    %889 = vmatpush1.msra.mxu0 %v81
    %890 = vmatprep.subr.mxu0 %v86
    %891 = vmatpush1.msra.mxu0 %v85
    %892 = vmatprep.subr.mxu0 %v90
    %893 = vmatpush1.msra.mxu0 %v89
    %894 = vmatprep.subr.mxu0 %v94
    %895 = vmatpush1.msra.mxu0 %v93
    %896 = vmatprep.subr.mxu0 %v98
    %897 = vmatpush1.msra.mxu0 %v97
    %898 = vmatprep.subr.mxu0 0.0
    %899 = vmatpush1.msra.mxu0 0.0
    %900 = vmatprep.subr.mxu0 0.0
    %901 = vmatpush1.msra.mxu0 0.0
    %902 = vmatprep.subr.mxu0 0.0
    %903 = vmatpush1.msra.mxu0 0.0
    %904 = vmatprep.subr.mxu0 0.0
    %905 = vmatpush1.msra.mxu0 0.0
    %906 = vmatprep.subr.mxu0 0.0
    %907 = vmatpush1.msra.mxu0 0.0
    %908 = vmatprep.subr.mxu0 0.0
    %909 = vmatpush1.msra.mxu0 0.0
    %910 = vmatprep.subr.mxu0 0.0
    %911 = vmatpush1.msra.mxu0 0.0
    %912 = vmatprep.subr.mxu0 0.0
    %913 = vmatpush1.msra.mxu0 0.0
    %914 = vmatprep.subr.mxu0 0.0
    %915 = vmatpush1.msra.mxu0 0.0
    %916 = vmatprep.subr.mxu0 0.0
    %917 = vmatpush1.msra.mxu0 0.0
    %918 = vmatprep.subr.mxu0 0.0
    %919 = vmatpush1.msra.mxu0 0.0
    %920 = vmatprep.subr.mxu0 0.0
    %921 = vmatpush1.msra.mxu0 0.0
    %922 = vmatprep.subr.mxu0 0.0
    %923 = vmatpush1.msra.mxu0 0.0
    %924 = vmatprep.subr.mxu0 0.0
    %925 = vmatpush1.msra.mxu0 0.0
    %926 = vmatprep.subr.mxu0 0.0
    %927 = vmatpush1.msra.mxu0 0.0
    %928 = vmatprep.subr.mxu0 0.0
    %929 = vmatpush1.msra.mxu0 0.0
    %930 = vmatprep.mubr.f32.mxu0 0.0
    %931 = vmatmul.mubr.f32.gmra.mrb[0].mxu0 %v865
    %v932 = vpop.f32.mrb[0].mxu0
    %v933 = vadd.f32 0.0, %v932
    %v934 = vpop.f32.mrb[0].mxu0
    %v935 = vadd.f32 0.0, %v934
    %936 = vdwg.mxu0
    %937 = vmatprep.subr.mxu0 %v40
    %938 = vmatpush1.msra.mxu0 %v39
    %939 = vmatprep.subr.mxu0 %v44
    %940 = vmatpush1.msra.mxu0 %v43
    %941 = vmatprep.subr.mxu0 %v48
    %942 = vmatpush1.msra.mxu0 %v47
    %943 = vmatprep.subr.mxu0 %v52
    %944 = vmatpush1.msra.mxu0 %v51
    %945 = vmatprep.subr.mxu0 %v56
    %946 = vmatpush1.msra.mxu0 %v55
    %947 = vmatprep.subr.mxu0 %v60
    %948 = vmatpush1.msra.mxu0 %v59
    %949 = vmatprep.subr.mxu0 %v64
    %950 = vmatpush1.msra.mxu0 %v63
    %951 = vmatprep.subr.mxu0 %v68
    %952 = vmatpush1.msra.mxu0 %v67
    %953 = vmatprep.subr.mxu0 %v72
    %954 = vmatpush1.msra.mxu0 %v71
    %955 = vmatprep.subr.mxu0 %v76
    %956 = vmatpush1.msra.mxu0 %v75
    %957 = vmatprep.subr.mxu0 %v80
    %958 = vmatpush1.msra.mxu0 %v79
    %959 = vmatprep.subr.mxu0 %v84
    %960 = vmatpush1.msra.mxu0 %v83
    %961 = vmatprep.subr.mxu0 %v88
    %962 = vmatpush1.msra.mxu0 %v87
    %963 = vmatprep.subr.mxu0 %v92
    %964 = vmatpush1.msra.mxu0 %v91
    %965 = vmatprep.subr.mxu0 %v96
    %966 = vmatpush1.msra.mxu0 %v95
    %967 = vmatprep.subr.mxu0 %v100
    %968 = vmatpush1.msra.mxu0 %v99
    %969 = vmatprep.subr.mxu0 0.0
    %970 = vmatpush1.msra.mxu0 0.0
    %971 = vmatprep.subr.mxu0 0.0
    %972 = vmatpush1.msra.mxu0 0.0
    %973 = vmatprep.subr.mxu0 0.0
    %974 = vmatpush1.msra.mxu0 0.0
    %975 = vmatprep.subr.mxu0 0.0
    %976 = vmatpush1.msra.mxu0 0.0
    %977 = vmatprep.subr.mxu0 0.0
    %978 = vmatpush1.msra.mxu0 0.0
    %979 = vmatprep.subr.mxu0 0.0
    %980 = vmatpush1.msra.mxu0 0.0
    %981 = vmatprep.subr.mxu0 0.0
    %982 = vmatpush1.msra.mxu0 0.0
    %983 = vmatprep.subr.mxu0 0.0
    %984 = vmatpush1.msra.mxu0 0.0
    %985 = vmatprep.subr.mxu0 0.0
    %986 = vmatpush1.msra.mxu0 0.0
    %987 = vmatprep.subr.mxu0 0.0
    %988 = vmatpush1.msra.mxu0 0.0
    %989 = vmatprep.subr.mxu0 0.0
    %990 = vmatpush1.msra.mxu0 0.0
    %991 = vmatprep.subr.mxu0 0.0
    %992 = vmatpush1.msra.mxu0 0.0
    %993 = vmatprep.subr.mxu0 0.0
    %994 = vmatpush1.msra.mxu0 0.0
    %995 = vmatprep.subr.mxu0 0.0
    %996 = vmatpush1.msra.mxu0 0.0
    %997 = vmatprep.subr.mxu0 0.0
    %998 = vmatpush1.msra.mxu0 0.0
    %999 = vmatprep.subr.mxu0 0.0
    %1000 = vmatpush1.msra.mxu0 0.0
    %1001 = vmatprep.mubr.f32.mxu0 0.0
    %1002 = vmatmul.mubr.f32.gmra.mrb[0].mxu0 %v865
    %v1003 = vpop.f32.mrb[0].mxu0
    %v1004 = vadd.f32 0.0, %v1003
    %v1005 = vpop.f32.mrb[0].mxu0
    %v1006 = vadd.f32 0.0, %v1005
    %1007 = vdwg.mxu0
    %v1008 = vadd.f32 %v397, %v933
    %v1009 = vadd.f32 %v399, %v935
    %v1010 = vadd.f32 %v492, %v1004
    %v1011 = vadd.f32 %v494, %v1006
    %v1012 = vxor.u32 %v1008, 2147483648
    %v1013 = vmul.f32 %v1012, 1.442695
    %v1014 = vpow.pop %v1013
    %v1015 = vadd.f32 %v1014, 1.0
    %v1016 = vrcp.pop %v1015
    %v1017 = vmul.f32 1.0, %v1016
    %v1018 = vxor.u32 %v1009, 2147483648
    %v1019 = vmul.f32 %v1018, 1.442695
    %v1020 = vpow.pop %v1019
    %v1021 = vadd.f32 %v1020, 1.0
    %v1022 = vrcp.pop %v1021
    %v1023 = vmul.f32 1.0, %v1022
    %v1024 = vtanh.pop %v1010
    %v1025 = vxor.u32 %v1011, 2147483648
    %v1026 = vmul.f32 %v1025, 1.442695
    %v1027 = vpow.pop %v1026
    %v1028 = vadd.f32 %v1027, 1.0
    %v1029 = vrcp.pop %v1028
    %v1030 = vmul.f32 1.0, %v1029
    %v1031 = vmul.f32 %v1023, %v863
    %v1032 = vmul.f32 %v1017, %v1024
    %v1033 = vadd.f32 %v1031, %v1032
    %v1034 = vtanh.pop %v1033
    %v1035 = vmul.f32 %v1030, %v1034
    %1036 = vmatprep.subr.mxu0 %v38
    %1037 = vmatpush1.msra.mxu0 %v37
    %1038 = vmatprep.subr.mxu0 %v42
    %1039 = vmatpush1.msra.mxu0 %v41
    %1040 = vmatprep.subr.mxu0 %v46
    %1041 = vmatpush1.msra.mxu0 %v45
    %1042 = vmatprep.subr.mxu0 %v50
    %1043 = vmatpush1.msra.mxu0 %v49
    %1044 = vmatprep.subr.mxu0 %v54
    %1045 = vmatpush1.msra.mxu0 %v53
    %1046 = vmatprep.subr.mxu0 %v58
    %1047 = vmatpush1.msra.mxu0 %v57
    %1048 = vmatprep.subr.mxu0 %v62
    %1049 = vmatpush1.msra.mxu0 %v61
    %1050 = vmatprep.subr.mxu0 %v66
    %1051 = vmatpush1.msra.mxu0 %v65
    %1052 = vmatprep.subr.mxu0 %v70
    %1053 = vmatpush1.msra.mxu0 %v69
    %1054 = vmatprep.subr.mxu0 %v74
    %1055 = vmatpush1.msra.mxu0 %v73
    %1056 = vmatprep.subr.mxu0 %v78
    %1057 = vmatpush1.msra.mxu0 %v77
    %1058 = vmatprep.subr.mxu0 %v82
    %1059 = vmatpush1.msra.mxu0 %v81
    %1060 = vmatprep.subr.mxu0 %v86
    %1061 = vmatpush1.msra.mxu0 %v85
    %1062 = vmatprep.subr.mxu0 %v90
    %1063 = vmatpush1.msra.mxu0 %v89
    %1064 = vmatprep.subr.mxu0 %v94
    %1065 = vmatpush1.msra.mxu0 %v93
    %1066 = vmatprep.subr.mxu0 %v98
    %1067 = vmatpush1.msra.mxu0 %v97
    %1068 = vmatprep.subr.mxu0 0.0
    %1069 = vmatpush1.msra.mxu0 0.0
    %1070 = vmatprep.subr.mxu0 0.0
    %1071 = vmatpush1.msra.mxu0 0.0
    %1072 = vmatprep.subr.mxu0 0.0
    %1073 = vmatpush1.msra.mxu0 0.0
    %1074 = vmatprep.subr.mxu0 0.0
    %1075 = vmatpush1.msra.mxu0 0.0
    %1076 = vmatprep.subr.mxu0 0.0
    %1077 = vmatpush1.msra.mxu0 0.0
    %1078 = vmatprep.subr.mxu0 0.0
    %1079 = vmatpush1.msra.mxu0 0.0
    %1080 = vmatprep.subr.mxu0 0.0
    %1081 = vmatpush1.msra.mxu0 0.0
    %1082 = vmatprep.subr.mxu0 0.0
    %1083 = vmatpush1.msra.mxu0 0.0
    %1084 = vmatprep.subr.mxu0 0.0
    %1085 = vmatpush1.msra.mxu0 0.0
    %1086 = vmatprep.subr.mxu0 0.0
    %1087 = vmatpush1.msra.mxu0 0.0
    %1088 = vmatprep.subr.mxu0 0.0
    %1089 = vmatpush1.msra.mxu0 0.0
    %1090 = vmatprep.subr.mxu0 0.0
    %1091 = vmatpush1.msra.mxu0 0.0
    %1092 = vmatprep.subr.mxu0 0.0
    %1093 = vmatpush1.msra.mxu0 0.0
    %1094 = vmatprep.subr.mxu0 0.0
    %1095 = vmatpush1.msra.mxu0 0.0
    %1096 = vmatprep.subr.mxu0 0.0
    %1097 = vmatpush1.msra.mxu0 0.0
    %1098 = vmatprep.subr.mxu0 0.0
    %1099 = vmatpush1.msra.mxu0 0.0
    %1100 = vmatprep.mubr.f32.mxu0 0.0
    %1101 = vmatmul.mubr.f32.gmra.mrb[0].mxu0 %v1035
    %v1102 = vpop.f32.mrb[0].mxu0
    %v1103 = vadd.f32 0.0, %v1102
    %v1104 = vpop.f32.mrb[0].mxu0
    %v1105 = vadd.f32 0.0, %v1104
    %1106 = vdwg.mxu0
    %1107 = vmatprep.subr.mxu0 %v40
    %1108 = vmatpush1.msra.mxu0 %v39
    %1109 = vmatprep.subr.mxu0 %v44
    %1110 = vmatpush1.msra.mxu0 %v43
    %1111 = vmatprep.subr.mxu0 %v48
    %1112 = vmatpush1.msra.mxu0 %v47
    %1113 = vmatprep.subr.mxu0 %v52
    %1114 = vmatpush1.msra.mxu0 %v51
    %1115 = vmatprep.subr.mxu0 %v56
    %1116 = vmatpush1.msra.mxu0 %v55
    %1117 = vmatprep.subr.mxu0 %v60
    %1118 = vmatpush1.msra.mxu0 %v59
    %1119 = vmatprep.subr.mxu0 %v64
    %1120 = vmatpush1.msra.mxu0 %v63
    %1121 = vmatprep.subr.mxu0 %v68
    %1122 = vmatpush1.msra.mxu0 %v67
    %1123 = vmatprep.subr.mxu0 %v72
    %1124 = vmatpush1.msra.mxu0 %v71
    %1125 = vmatprep.subr.mxu0 %v76
    %1126 = vmatpush1.msra.mxu0 %v75
    %1127 = vmatprep.subr.mxu0 %v80
    %1128 = vmatpush1.msra.mxu0 %v79
    %1129 = vmatprep.subr.mxu0 %v84
    %1130 = vmatpush1.msra.mxu0 %v83
    %1131 = vmatprep.subr.mxu0 %v88
    %1132 = vmatpush1.msra.mxu0 %v87
    %1133 = vmatprep.subr.mxu0 %v92
    %1134 = vmatpush1.msra.mxu0 %v91
    %1135 = vmatprep.subr.mxu0 %v96
    %1136 = vmatpush1.msra.mxu0 %v95
    %1137 = vmatprep.subr.mxu0 %v100
    %1138 = vmatpush1.msra.mxu0 %v99
    %1139 = vmatprep.subr.mxu0 0.0
    %1140 = vmatpush1.msra.mxu0 0.0
    %1141 = vmatprep.subr.mxu0 0.0
    %1142 = vmatpush1.msra.mxu0 0.0
    %1143 = vmatprep.subr.mxu0 0.0
    %1144 = vmatpush1.msra.mxu0 0.0
    %1145 = vmatprep.subr.mxu0 0.0
    %1146 = vmatpush1.msra.mxu0 0.0
    %1147 = vmatprep.subr.mxu0 0.0
    %1148 = vmatpush1.msra.mxu0 0.0
    %1149 = vmatprep.subr.mxu0 0.0
    %1150 = vmatpush1.msra.mxu0 0.0
    %1151 = vmatprep.subr.mxu0 0.0
    %1152 = vmatpush1.msra.mxu0 0.0
    %1153 = vmatprep.subr.mxu0 0.0
    %1154 = vmatpush1.msra.mxu0 0.0
    %1155 = vmatprep.subr.mxu0 0.0
    %1156 = vmatpush1.msra.mxu0 0.0
    %1157 = vmatprep.subr.mxu0 0.0
    %1158 = vmatpush1.msra.mxu0 0.0
    %1159 = vmatprep.subr.mxu0 0.0
    %1160 = vmatpush1.msra.mxu0 0.0
    %1161 = vmatprep.subr.mxu0 0.0
    %1162 = vmatpush1.msra.mxu0 0.0
    %1163 = vmatprep.subr.mxu0 0.0
    %1164 = vmatpush1.msra.mxu0 0.0
    %1165 = vmatprep.subr.mxu0 0.0
    %1166 = vmatpush1.msra.mxu0 0.0
    %1167 = vmatprep.subr.mxu0 0.0
    %1168 = vmatpush1.msra.mxu0 0.0
    %1169 = vmatprep.subr.mxu0 0.0
    %1170 = vmatpush1.msra.mxu0 0.0
    %1171 = vmatprep.mubr.f32.mxu0 0.0
    %1172 = vmatmul.mubr.f32.gmra.mrb[0].mxu0 %v1035
    %v1173 = vpop.f32.mrb[0].mxu0
    %v1174 = vadd.f32 0.0, %v1173
    %v1175 = vpop.f32.mrb[0].mxu0
    %v1176 = vadd.f32 0.0, %v1175
    %1177 = vdwg.mxu0
    %v1178 = vadd.f32 %v403, %v1103
    %v1179 = vadd.f32 %v405, %v1105
    %v1180 = vadd.f32 %v498, %v1174
    %v1181 = vadd.f32 %v500, %v1176
    %v1182 = vxor.u32 %v1178, 2147483648
    %v1183 = vmul.f32 %v1182, 1.442695
    %v1184 = vpow.pop %v1183
    %v1185 = vadd.f32 %v1184, 1.0
    %v1186 = vrcp.pop %v1185
    %v1187 = vmul.f32 1.0, %v1186
    %v1188 = vxor.u32 %v1179, 2147483648
    %v1189 = vmul.f32 %v1188, 1.442695
    %v1190 = vpow.pop %v1189
    %v1191 = vadd.f32 %v1190, 1.0
    %v1192 = vrcp.pop %v1191
    %v1193 = vmul.f32 1.0, %v1192
    %v1194 = vtanh.pop %v1180
    %v1195 = vxor.u32 %v1181, 2147483648
    %v1196 = vmul.f32 %v1195, 1.442695
    %v1197 = vpow.pop %v1196
    %v1198 = vadd.f32 %v1197, 1.0
    %v1199 = vrcp.pop %v1198
    %v1200 = vmul.f32 1.0, %v1199
    %v1201 = vmul.f32 %v1193, %v1033
    %v1202 = vmul.f32 %v1187, %v1194
    %v1203 = vadd.f32 %v1201, %v1202
    %v1204 = vtanh.pop %v1203
    %v1205 = vmul.f32 %v1200, %v1204
    %v1207 = vsel %vm165, %v135, 0
    %1209 = vmatprep.subr.mxu0 0.0
    %1210 = vmatpush1.msra.mxu0 %v133
    %1211 = vmatprep.subr.mxu0 0.0
    %1212 = vmatpush1.msra.mxu0 %v134
    %1213 = vmatprep.subr.mxu0 0.0
    %1214 = vmatpush1.msra.mxu0 %v1207
    %1215 = vmatprep.subr.mxu0 0.0
    %1216 = vmatpush1.msra.mxu0 0.0
    %1217 = vmatprep.subr.mxu0 0.0
    %1218 = vmatpush1.msra.mxu0 0.0
    %1219 = vmatprep.subr.mxu0 0.0
    %1220 = vmatpush1.msra.mxu0 0.0
    %1221 = vmatprep.subr.mxu0 0.0
    %1222 = vmatpush1.msra.mxu0 0.0
    %1223 = vmatprep.subr.mxu0 0.0
    %1224 = vmatpush1.msra.mxu0 0.0
    %1225 = vmatprep.subr.mxu0 0.0
    %1226 = vmatpush1.msra.mxu0 0.0
    %1227 = vmatprep.subr.mxu0 0.0
    %1228 = vmatpush1.msra.mxu0 0.0
    %1229 = vmatprep.subr.mxu0 0.0
    %1230 = vmatpush1.msra.mxu0 0.0
    %1231 = vmatprep.subr.mxu0 0.0
    %1232 = vmatpush1.msra.mxu0 0.0
    %1233 = vmatprep.subr.mxu0 0.0
    %1234 = vmatpush1.msra.mxu0 0.0
    %1235 = vmatprep.subr.mxu0 0.0
    %1236 = vmatpush1.msra.mxu0 0.0
    %1237 = vmatprep.subr.mxu0 0.0
    %1238 = vmatpush1.msra.mxu0 0.0
    %1239 = vmatprep.subr.mxu0 0.0
    %1240 = vmatpush1.msra.mxu0 0.0
    %1241 = vmatprep.subr.mxu0 0.0
    %1242 = vmatpush1.msra.mxu0 0.0
    %1243 = vmatprep.subr.mxu0 0.0
    %1244 = vmatpush1.msra.mxu0 0.0
    %1245 = vmatprep.subr.mxu0 0.0
    %1246 = vmatpush1.msra.mxu0 0.0
    %1247 = vmatprep.subr.mxu0 0.0
    %1248 = vmatpush1.msra.mxu0 0.0
    %1249 = vmatprep.subr.mxu0 0.0
    %1250 = vmatpush1.msra.mxu0 0.0
    %1251 = vmatprep.subr.mxu0 0.0
    %1252 = vmatpush1.msra.mxu0 0.0
    %1253 = vmatprep.subr.mxu0 0.0
    %1254 = vmatpush1.msra.mxu0 0.0
    %1255 = vmatprep.subr.mxu0 0.0
    %1256 = vmatpush1.msra.mxu0 0.0
    %1257 = vmatprep.subr.mxu0 0.0
    %1258 = vmatpush1.msra.mxu0 0.0
    %1259 = vmatprep.subr.mxu0 0.0
    %1260 = vmatpush1.msra.mxu0 0.0
    %1261 = vmatprep.subr.mxu0 0.0
    %1262 = vmatpush1.msra.mxu0 0.0
    %1263 = vmatprep.subr.mxu0 0.0
    %1264 = vmatpush1.msra.mxu0 0.0
    %1265 = vmatprep.subr.mxu0 0.0
    %1266 = vmatpush1.msra.mxu0 0.0
    %1267 = vmatprep.subr.mxu0 0.0
    %1268 = vmatpush1.msra.mxu0 0.0
    %1269 = vmatprep.subr.mxu0 0.0
    %1270 = vmatpush1.msra.mxu0 0.0
    %1271 = vmatprep.subr.mxu0 0.0
    %1272 = vmatpush1.msra.mxu0 0.0
    %1273 = vmatprep.mubr.f32.mxu0 0.0
    %1274 = vmatmul.mubr.f32.gmra.mrb[0].mxu0 %v163
    %v1275 = vpop.f32.mrb[0].mxu0
    %v1276 = vadd.f32 0.0, %v1275
    %v1277 = vpop.f32.mrb[0].mxu0
    %1278 = vdwg.mxu0
    %1279 = vmatprep.subr.mxu0 0.0
    %1280 = vmatpush1.msra.mxu0 %v101
    %1281 = vmatprep.subr.mxu0 0.0
    %1282 = vmatpush1.msra.mxu0 %v102
    %1283 = vmatprep.subr.mxu0 0.0
    %1284 = vmatpush1.msra.mxu0 %v103
    %1285 = vmatprep.subr.mxu0 0.0
    %1286 = vmatpush1.msra.mxu0 %v104
    %1287 = vmatprep.subr.mxu0 0.0
    %1288 = vmatpush1.msra.mxu0 %v105
    %1289 = vmatprep.subr.mxu0 0.0
    %1290 = vmatpush1.msra.mxu0 %v106
    %1291 = vmatprep.subr.mxu0 0.0
    %1292 = vmatpush1.msra.mxu0 %v107
    %1293 = vmatprep.subr.mxu0 0.0
    %1294 = vmatpush1.msra.mxu0 %v108
    %1295 = vmatprep.subr.mxu0 0.0
    %1296 = vmatpush1.msra.mxu0 %v109
    %1297 = vmatprep.subr.mxu0 0.0
    %1298 = vmatpush1.msra.mxu0 %v110
    %1299 = vmatprep.subr.mxu0 0.0
    %1300 = vmatpush1.msra.mxu0 %v111
    %1301 = vmatprep.subr.mxu0 0.0
    %1302 = vmatpush1.msra.mxu0 %v112
    %1303 = vmatprep.subr.mxu0 0.0
    %1304 = vmatpush1.msra.mxu0 %v113
    %1305 = vmatprep.subr.mxu0 0.0
    %1306 = vmatpush1.msra.mxu0 %v114
    %1307 = vmatprep.subr.mxu0 0.0
    %1308 = vmatpush1.msra.mxu0 %v115
    %1309 = vmatprep.subr.mxu0 0.0
    %1310 = vmatpush1.msra.mxu0 %v116
    %1311 = vmatprep.subr.mxu0 0.0
    %1312 = vmatpush1.msra.mxu0 0.0
    %1313 = vmatprep.subr.mxu0 0.0
    %1314 = vmatpush1.msra.mxu0 0.0
    %1315 = vmatprep.subr.mxu0 0.0
    %1316 = vmatpush1.msra.mxu0 0.0
    %1317 = vmatprep.subr.mxu0 0.0
    %1318 = vmatpush1.msra.mxu0 0.0
    %1319 = vmatprep.subr.mxu0 0.0
    %1320 = vmatpush1.msra.mxu0 0.0
    %1321 = vmatprep.subr.mxu0 0.0
    %1322 = vmatpush1.msra.mxu0 0.0
    %1323 = vmatprep.subr.mxu0 0.0
    %1324 = vmatpush1.msra.mxu0 0.0
    %1325 = vmatprep.subr.mxu0 0.0
    %1326 = vmatpush1.msra.mxu0 0.0
    %1327 = vmatprep.subr.mxu0 0.0
    %1328 = vmatpush1.msra.mxu0 0.0
    %1329 = vmatprep.subr.mxu0 0.0
    %1330 = vmatpush1.msra.mxu0 0.0
    %1331 = vmatprep.subr.mxu0 0.0
    %1332 = vmatpush1.msra.mxu0 0.0
    %1333 = vmatprep.subr.mxu0 0.0
    %1334 = vmatpush1.msra.mxu0 0.0
    %1335 = vmatprep.subr.mxu0 0.0
    %1336 = vmatpush1.msra.mxu0 0.0
    %1337 = vmatprep.subr.mxu0 0.0
    %1338 = vmatpush1.msra.mxu0 0.0
    %1339 = vmatprep.subr.mxu0 0.0
    %1340 = vmatpush1.msra.mxu0 0.0
    %1341 = vmatprep.subr.mxu0 0.0
    %1342 = vmatpush1.msra.mxu0 0.0
    %1343 = vmatprep.mubr.f32.mxu0 0.0
    %1344 = vmatmul.mubr.f32.gmra.mrb[0].mxu0 %v1205
    %v1345 = vpop.f32.mrb[0].mxu0
    %v1346 = vadd.f32 %v1276, %v1345
    %v1347 = vpop.f32.mrb[0].mxu0
    %1348 = vdwg.mxu0
    %v1349 = vadd.f32 %v1346, %v142
    %v1350 = vmax.f32 %v1349, 0.0
    %1351 = vmatprep.subr.mxu0 0.0
    %1352 = vmatpush1.msra.mxu0 %v117
    %1353 = vmatprep.subr.mxu0 0.0
    %1354 = vmatpush1.msra.mxu0 %v118
    %1355 = vmatprep.subr.mxu0 0.0
    %1356 = vmatpush1.msra.mxu0 %v119
    %1357 = vmatprep.subr.mxu0 0.0
    %1358 = vmatpush1.msra.mxu0 %v120
    %1359 = vmatprep.subr.mxu0 0.0
    %1360 = vmatpush1.msra.mxu0 %v121
    %1361 = vmatprep.subr.mxu0 0.0
    %1362 = vmatpush1.msra.mxu0 %v122
    %1363 = vmatprep.subr.mxu0 0.0
    %1364 = vmatpush1.msra.mxu0 %v123
    %1365 = vmatprep.subr.mxu0 0.0
    %1366 = vmatpush1.msra.mxu0 %v124
    %1367 = vmatprep.subr.mxu0 0.0
    %1368 = vmatpush1.msra.mxu0 %v125
    %1369 = vmatprep.subr.mxu0 0.0
    %1370 = vmatpush1.msra.mxu0 %v126
    %1371 = vmatprep.subr.mxu0 0.0
    %1372 = vmatpush1.msra.mxu0 %v127
    %1373 = vmatprep.subr.mxu0 0.0
    %1374 = vmatpush1.msra.mxu0 %v128
    %1375 = vmatprep.subr.mxu0 0.0
    %1376 = vmatpush1.msra.mxu0 %v129
    %1377 = vmatprep.subr.mxu0 0.0
    %1378 = vmatpush1.msra.mxu0 %v130
    %1379 = vmatprep.subr.mxu0 0.0
    %1380 = vmatpush1.msra.mxu0 %v131
    %1381 = vmatprep.subr.mxu0 0.0
    %1382 = vmatpush1.msra.mxu0 %v132
    %1383 = vmatprep.subr.mxu0 0.0
    %1384 = vmatpush1.msra.mxu0 0.0
    %1385 = vmatprep.subr.mxu0 0.0
    %1386 = vmatpush1.msra.mxu0 0.0
    %1387 = vmatprep.subr.mxu0 0.0
    %1388 = vmatpush1.msra.mxu0 0.0
    %1389 = vmatprep.subr.mxu0 0.0
    %1390 = vmatpush1.msra.mxu0 0.0
    %1391 = vmatprep.subr.mxu0 0.0
    %1392 = vmatpush1.msra.mxu0 0.0
    %1393 = vmatprep.subr.mxu0 0.0
    %1394 = vmatpush1.msra.mxu0 0.0
    %1395 = vmatprep.subr.mxu0 0.0
    %1396 = vmatpush1.msra.mxu0 0.0
    %1397 = vmatprep.subr.mxu0 0.0
    %1398 = vmatpush1.msra.mxu0 0.0
    %1399 = vmatprep.subr.mxu0 0.0
    %1400 = vmatpush1.msra.mxu0 0.0
    %1401 = vmatprep.subr.mxu0 0.0
    %1402 = vmatpush1.msra.mxu0 0.0
    %1403 = vmatprep.subr.mxu0 0.0
    %1404 = vmatpush1.msra.mxu0 0.0
    %1405 = vmatprep.subr.mxu0 0.0
    %1406 = vmatpush1.msra.mxu0 0.0
    %1407 = vmatprep.subr.mxu0 0.0
    %1408 = vmatpush1.msra.mxu0 0.0
    %1409 = vmatprep.subr.mxu0 0.0
    %1410 = vmatpush1.msra.mxu0 0.0
    %1411 = vmatprep.subr.mxu0 0.0
    %1412 = vmatpush1.msra.mxu0 0.0
    %1413 = vmatprep.subr.mxu0 0.0
    %1414 = vmatpush1.msra.mxu0 0.0
    %1415 = vmatprep.mubr.f32.mxu0 0.0
    %1416 = vmatmul.mubr.f32.gmra.mrb[0].mxu0 %v1350
    %v1417 = vpop.f32.mrb[0].mxu0
    %v1418 = vadd.f32 %v143, %v1417
    %v1419 = vpop.f32.mrb[0].mxu0
    %1420 = vdwg.mxu0
    %1421 = vst [vmem:[%s2] sm:$0xff] %v1418
    // Predicated region
    $region14: #{mind_lstm_forward.1} parent=1 // pred_check
      _
    $region15: #{mind_lstm_forward.1} parent=1 // pred_check_branch
      %1423 = sbr.rel (0) target = $region17
    $region16: #{mind_lstm_forward.1} parent=1 // pred_region
      _
    $region17: #{mind_lstm_forward.1} parent=1 // pred_fallthru
      _
    // Predicated region
    $region18: #{mind_lstm_forward.1} parent=1 // pred_check
      _
    $region19: #{mind_lstm_forward.1} parent=1 // pred_check_branch
      %1425 = sbr.rel (0) target = $region21
    $region20: #{mind_lstm_forward.1} parent=1 // pred_region
      _
    $region21: #{mind_lstm_forward.1} parent=1 // pred_fallthru
      _
    %1426 = vsyncpa [#allocation3], 1

</llo_original>
